<compile_context>
chip_gen: v7x
topology: tpu7x:2x2x1
jax: 0.10.0
libtpu: 0.0.40
codegen_flags: <defaults>
</compile_context>

<pallas_src>
import functools

import jax
import jax.numpy as jnp
from jax.experimental import pallas as pl
from jax.experimental.pallas import tpu as pltpu

LANE = 128

_VMEM_SPEC = pl.BlockSpec(memory_space=pltpu.MemorySpace.VMEM)


# ---------------------------------------------------------------------------
# Fused Pallas kernel
# ---------------------------------------------------------------------------
def gcn_fused_kernel(k_order,
                     l_ref, x_ref, p_ref,
                     w1_ref, b1_ref, w2_ref, b2_ref, w3_ref, b3_ref,
                     wl_ref, bl_ref, out_ref):
    """conv1->relu->conv2->relu->conv3->relu->mean_pool->linear, all in VMEM."""
    L = l_ref[...]                                             # [N, N] bf16, resident

    def cheb_relu(x, w_ref, b_ref):
        # x: [N, F_in] f32.  Chebyshev recursion T0 = x, T1 = L x, Tk = 2 L T_{k-1} - T_{k-2}
        # with per-k accumulation (no concat buffer).  The L@T operand is cast to bf16
        # (MXU full rate); all accumulations stay f32.
        acc = jnp.dot(x, w_ref[0], preferred_element_type=jnp.float32)
        t_prev = x
        t_curr = x
        if k_order > 1:
            t_curr = jnp.dot(L, x.astype(jnp.bfloat16),
                             preferred_element_type=jnp.float32)
            acc = acc + jnp.dot(t_curr, w_ref[1], preferred_element_type=jnp.float32)
        for k in range(2, k_order):  # static unroll (k_order is a Python int)
            t_new = 2.0 * jnp.dot(L, t_curr.astype(jnp.bfloat16),
                                  preferred_element_type=jnp.float32) - t_prev
            acc = acc + jnp.dot(t_new, w_ref[k], preferred_element_type=jnp.float32)
            t_prev, t_curr = t_curr, t_new
        return jnp.maximum(acc + b_ref[...], 0.0)              # [N, F_out] f32

    h = cheb_relu(x_ref[...], w1_ref, b1_ref)                  # [N, 64]
    h = cheb_relu(h, w2_ref, b2_ref)                           # [N, 64]
    h = cheb_relu(h, w3_ref, b3_ref)                           # [N, 128]  (cam_conv)

    pooled = jnp.dot(p_ref[...], h, preferred_element_type=jnp.float32)      # [G, 128]
    out_ref[...] = (jnp.dot(pooled, wl_ref[...], preferred_element_type=jnp.float32)
                    + bl_ref[...])                                            # [G, 128]


# ---------------------------------------------------------------------------
# VMEM budgeting (single-buffered: there is no grid, hence no double buffering)
# ---------------------------------------------------------------------------
def _vmem_budget(operands, n, g, k_order):
    operand_bytes = sum(int(a.size) * a.dtype.itemsize for a in operands)
    # In-kernel intermediates (upper bound, feature widths <= 128):
    #   k_order live Chebyshev tensors [N, F] f32, one bf16 cast of the current T,
    #   the f32 accumulator, pooled [G,128] f32.
    intermediates = n * (k_order * LANE * 4 + LANE * 2 + LANE * 4) + g * LANE * 4
    need = operand_bytes + intermediates + (4 << 20)            # fixed headroom
    try:
        cap = int(pltpu.get_tpu_info().vmem_capacity_bytes)
    except Exception:
        cap = 64 << 20                                          # conservative fallback
    # Never request 100% of physical VMEM: leave room for compiler internal scratch.
    # => ~54 MiB on v7x (64 MiB phys), ~108 MiB on v5e/v6e (128 MiB phys).
    hard_cap = int(0.85 * cap)
    if need > hard_cap:
        # TODO(synk): fall back to the row-tiled HBM-streaming path here.
        raise NotImplementedError(
            f"Fully VMEM-resident path needs ~{need >> 20} MiB > cap {hard_cap >> 20} MiB; "
            "row-tiled streaming path not implemented.")
    return int(min(max(need, 16 << 20), hard_cap))


# ---------------------------------------------------------------------------
# Wrapper
# ---------------------------------------------------------------------------
def _pad_last(a, size):
    pad = size - a.shape[-1]
    if pad <= 0:
        return a
    widths = [(0, 0)] * (a.ndim - 1) + [(0, pad)]
    return jnp.pad(a, widths)


def gcn_forward(L, x, P, params, *, k_order):
    n = x.shape[0]
    g = P.shape[0]
    num_classes = params["wl"].shape[1]

    L_bf16 = L.astype(jnp.bfloat16)                              # halve L's footprint
    b1 = params["b1"].reshape(1, -1)
    b2 = params["b2"].reshape(1, -1)
    b3 = params["b3"].reshape(1, -1)
    wl = _pad_last(params["wl"], LANE)                           # [128, 128] lane-dense out
    bl = _pad_last(params["bl"].reshape(1, -1), LANE)            # [1, 128]

    operands = (L_bf16, x, P,
                params["w1"], b1, params["w2"], b2, params["w3"], b3,
                wl, bl)

    vmem_limit = _vmem_budget(operands, n, g, k_order)

    out_pad = pl.pallas_call(
        functools.partial(gcn_fused_kernel, k_order),
        out_shape=jax.ShapeDtypeStruct((g, LANE), jnp.float32),
        in_specs=[_VMEM_SPEC] * len(operands),
        out_specs=_VMEM_SPEC,
        compiler_params=pltpu.CompilerParams(vmem_limit_bytes=vmem_limit),
    )(*operands)
    return out_pad[:, :num_classes]


# ---------------------------------------------------------------------------
# Plain-JAX glue: dense scaled Laplacian and mean-pool matrix construction
# ---------------------------------------------------------------------------
def build_scaled_laplacian(edge_index, edge_attr, num_nodes):
    row, col = edge_index[0], edge_index[1]
    deg = jnp.zeros((num_nodes,), jnp.float32).at[row].add(edge_attr)
    deg_inv_sqrt = jnp.where(deg > 0.0, 1.0 / jnp.sqrt(deg), 0.0)
    norm_w = -deg_inv_sqrt[row] * edge_attr * deg_inv_sqrt[col]
    L = jnp.zeros((num_nodes, num_nodes), jnp.float32).at[row, col].add(norm_w)
    return L


def build_mean_pool_matrix(batch, num_graphs):
    onehot = (batch[None, :] == jnp.arange(num_graphs)[:, None]).astype(jnp.float32)
    counts = jnp.maximum(onehot.sum(axis=1, keepdims=True), 1.0)
    return onehot / counts


# ---------------------------------------------------------------------------
# Pure-JAX f32 reference (for correctness check)
# ---------------------------------------------------------------------------
def gcn_forward_ref(L, x, P, params):
    def cheb_relu(x, w, b):
        K = w.shape[0]
        acc = x @ w[0]
        t_prev, t_curr = x, x
        if K > 1:
            t_curr = L @ x
            acc = acc + t_curr @ w[1]
        for k in range(2, K):
            t_new = 2.0 * (L @ t_curr) - t_prev
            acc = acc + t_new @ w[k]
            t_prev, t_curr = t_curr, t_new
        return jnp.maximum(acc + b, 0.0)

    h = cheb_relu(x, params["w1"], params["b1"])
    h = cheb_relu(h, params["w2"], params["b2"])
    h = cheb_relu(h, params["w3"], params["b3"])
    return P @ h @ params["wl"] + params["bl"]


# ---------------------------------------------------------------------------
if __name__ == "__main__":
    key = jax.random.PRNGKey(0)
    num_features, num_classes, k_order = 8, 4, 3
    num_graphs, nodes_per_graph = 2, 8
    N = num_graphs * nodes_per_graph

    # Bidirectional ring inside each graph (deterministic topology).
    rows, cols = [], []
    for gi in range(num_graphs):
        for i in range(nodes_per_graph):
            a = gi * nodes_per_graph + i
            b = gi * nodes_per_graph + (i + 1) % nodes_per_graph
            rows += [a, b]
            cols += [b, a]
    edge_index = jnp.array([rows, cols], dtype=jnp.int32)

    keys = jax.random.split(key, 12)
    edge_attr = jax.random.uniform(keys[0], (edge_index.shape[1],), jnp.float32, 0.5, 1.5)
    x = jax.random.normal(keys[1], (N, num_features), dtype=jnp.float32)
    batch = jnp.repeat(jnp.arange(num_graphs, dtype=jnp.int32), nodes_per_graph)

    def glorot(k, shape):
        fan_in, fan_out = shape[-2], shape[-1]
        s = jnp.sqrt(6.0 / (fan_in + fan_out))
        return jax.random.uniform(k, shape, jnp.float32, -s, s)

    params = {
        "w1": glorot(keys[2], (k_order, num_features, 64)),
        "b1": 0.01 * jax.random.normal(keys[3], (64,), jnp.float32),
        "w2": glorot(keys[4], (k_order, 64, 64)),
        "b2": 0.01 * jax.random.normal(keys[5], (64,), jnp.float32),
        "w3": glorot(keys[6], (k_order, 64, 128)),
        "b3": 0.01 * jax.random.normal(keys[7], (128,), jnp.float32),
        "wl": glorot(keys[8], (128, num_classes)),  # Linear weight, pre-transposed [in, out]
        "bl": 0.01 * jax.random.normal(keys[9], (num_classes,), jnp.float32),
    }

    L_hat = build_scaled_laplacian(edge_index, edge_attr, N)
    P = build_mean_pool_matrix(batch, num_graphs)

    fwd = jax.jit(functools.partial(gcn_forward, k_order=k_order))
    out = fwd(L_hat, x, P, params)
    jax.block_until_ready(out)

    assert out.shape == (num_graphs, num_classes), out.shape
    assert jnp.all(jnp.isfinite(out))

    # f32 reference; kernel uses bf16 for L@T operands (f32 accumulation), so the
    # original 1e-4 tolerance is relaxed to 2e-2.
    ref = gcn_forward_ref(L_hat, x, P, params)
    assert jnp.allclose(out, ref, rtol=2e-2, atol=2e-2), (out, ref)

    print("KERNEL_OK")
</pallas_src>

<mosaic_0001>
module attributes {stable_mosaic.version = 11 : i64} {
  func.func @gcn_fused_kernel(%arg0: memref<16x16xbf16, #tpu.memory_space<vmem>>, %arg1: memref<16x8xf32, #tpu.memory_space<vmem>>, %arg2: memref<2x16xf32, #tpu.memory_space<vmem>>, %arg3: memref<3x8x64xf32, #tpu.memory_space<vmem>>, %arg4: memref<1x64xf32, #tpu.memory_space<vmem>>, %arg5: memref<3x64x64xf32, #tpu.memory_space<vmem>>, %arg6: memref<1x64xf32, #tpu.memory_space<vmem>>, %arg7: memref<3x64x128xf32, #tpu.memory_space<vmem>>, %arg8: memref<1x128xf32, #tpu.memory_space<vmem>>, %arg9: memref<128x128xf32, #tpu.memory_space<vmem>>, %arg10: memref<1x128xf32, #tpu.memory_space<vmem>>, %arg11: memref<2x128xf32, #tpu.memory_space<vmem>>) attributes {dimension_semantics = [], scalar_prefetch = 0 : i64, scratch_operands = 0 : i64, tpu.core_type = #tpu.core_type<tc>} {
    %c0 = arith.constant 0 : index
    %c0_0 = arith.constant 0 : index
    %0 = vector.load %arg0[%c0, %c0_0] : memref<16x16xbf16, #tpu.memory_space<vmem>>, vector<16x16xbf16>
    %c0_1 = arith.constant 0 : index
    %c0_2 = arith.constant 0 : index
    %1 = vector.load %arg1[%c0_1, %c0_2] : memref<16x8xf32, #tpu.memory_space<vmem>>, vector<16x8xf32>
    %c0_3 = arith.constant 0 : index
    %c0_4 = arith.constant 0 : index
    %c0_5 = arith.constant 0 : index
    %2 = vector.load %arg3[%c0_3, %c0_4, %c0_5] : memref<3x8x64xf32, #tpu.memory_space<vmem>>, vector<1x8x64xf32>
    %3 = vector.shape_cast %2 : vector<1x8x64xf32> to vector<8x64xf32>
    %cst = arith.constant dense<0.000000e+00> : vector<16x64xf32>
    %4 = tpu.matmul %1, %3, %cst {dimension_numbers = #tpu.dot_dimension_numbers<[1], [0], [0], [1], [0, 0, 1, 1], [], []>} : vector<16x8xf32>, vector<8x64xf32>, vector<16x64xf32> -> vector<16x64xf32>
    %5 = arith.truncf %1 : vector<16x8xf32> to vector<16x8xbf16>
    %cst_6 = arith.constant dense<0.000000e+00> : vector<16x8xf32>
    %6 = tpu.matmul %0, %5, %cst_6 {dimension_numbers = #tpu.dot_dimension_numbers<[1], [0], [0], [1], [0, 0, 1, 1], [], []>} : vector<16x16xbf16>, vector<16x8xbf16>, vector<16x8xf32> -> vector<16x8xf32>
    %c1 = arith.constant 1 : index
    %c0_7 = arith.constant 0 : index
    %c0_8 = arith.constant 0 : index
    %7 = vector.load %arg3[%c1, %c0_7, %c0_8] : memref<3x8x64xf32, #tpu.memory_space<vmem>>, vector<1x8x64xf32>
    %8 = vector.shape_cast %7 : vector<1x8x64xf32> to vector<8x64xf32>
    %cst_9 = arith.constant dense<0.000000e+00> : vector<16x64xf32>
    %9 = tpu.matmul %6, %8, %cst_9 {dimension_numbers = #tpu.dot_dimension_numbers<[1], [0], [0], [1], [0, 0, 1, 1], [], []>} : vector<16x8xf32>, vector<8x64xf32>, vector<16x64xf32> -> vector<16x64xf32>
    %10 = arith.addf %4, %9 : vector<16x64xf32>
    %11 = arith.truncf %6 : vector<16x8xf32> to vector<16x8xbf16>
    %cst_10 = arith.constant dense<0.000000e+00> : vector<16x8xf32>
    %12 = tpu.matmul %0, %11, %cst_10 {dimension_numbers = #tpu.dot_dimension_numbers<[1], [0], [0], [1], [0, 0, 1, 1], [], []>} : vector<16x16xbf16>, vector<16x8xbf16>, vector<16x8xf32> -> vector<16x8xf32>
    %cst_11 = arith.constant 2.000000e+00 : f32
    %13 = vector.broadcast %cst_11 : f32 to vector<16x8xf32>
    %14 = arith.mulf %13, %12 : vector<16x8xf32>
    %15 = arith.subf %14, %1 : vector<16x8xf32>
    %c2 = arith.constant 2 : index
    %c0_12 = arith.constant 0 : index
    %c0_13 = arith.constant 0 : index
    %16 = vector.load %arg3[%c2, %c0_12, %c0_13] : memref<3x8x64xf32, #tpu.memory_space<vmem>>, vector<1x8x64xf32>
    %17 = vector.shape_cast %16 : vector<1x8x64xf32> to vector<8x64xf32>
    %cst_14 = arith.constant dense<0.000000e+00> : vector<16x64xf32>
    %18 = tpu.matmul %15, %17, %cst_14 {dimension_numbers = #tpu.dot_dimension_numbers<[1], [0], [0], [1], [0, 0, 1, 1], [], []>} : vector<16x8xf32>, vector<8x64xf32>, vector<16x64xf32> -> vector<16x64xf32>
    %19 = arith.addf %10, %18 : vector<16x64xf32>
    %c0_15 = arith.constant 0 : index
    %c0_16 = arith.constant 0 : index
    %20 = vector.load %arg4[%c0_15, %c0_16] : memref<1x64xf32, #tpu.memory_space<vmem>>, vector<1x64xf32>
    %21 = vector.broadcast %20 : vector<1x64xf32> to vector<16x64xf32>
    %22 = arith.addf %19, %21 : vector<16x64xf32>
    %cst_17 = arith.constant 0.000000e+00 : f32
    %23 = vector.broadcast %cst_17 : f32 to vector<16x64xf32>
    %24 = arith.maximumf %22, %23 : vector<16x64xf32>
    %c0_18 = arith.constant 0 : index
    %c0_19 = arith.constant 0 : index
    %c0_20 = arith.constant 0 : index
    %25 = vector.load %arg5[%c0_18, %c0_19, %c0_20] : memref<3x64x64xf32, #tpu.memory_space<vmem>>, vector<1x64x64xf32>
    %26 = vector.shape_cast %25 : vector<1x64x64xf32> to vector<64x64xf32>
    %cst_21 = arith.constant dense<0.000000e+00> : vector<16x64xf32>
    %27 = tpu.matmul %24, %26, %cst_21 {dimension_numbers = #tpu.dot_dimension_numbers<[1], [0], [0], [1], [0, 0, 1, 1], [], []>} : vector<16x64xf32>, vector<64x64xf32>, vector<16x64xf32> -> vector<16x64xf32>
    %28 = arith.truncf %24 : vector<16x64xf32> to vector<16x64xbf16>
    %cst_22 = arith.constant dense<0.000000e+00> : vector<16x64xf32>
    %29 = tpu.matmul %0, %28, %cst_22 {dimension_numbers = #tpu.dot_dimension_numbers<[1], [0], [0], [1], [0, 0, 1, 1], [], []>} : vector<16x16xbf16>, vector<16x64xbf16>, vector<16x64xf32> -> vector<16x64xf32>
    %c1_23 = arith.constant 1 : index
    %c0_24 = arith.constant 0 : index
    %c0_25 = arith.constant 0 : index
    %30 = vector.load %arg5[%c1_23, %c0_24, %c0_25] : memref<3x64x64xf32, #tpu.memory_space<vmem>>, vector<1x64x64xf32>
    %31 = vector.shape_cast %30 : vector<1x64x64xf32> to vector<64x64xf32>
    %cst_26 = arith.constant dense<0.000000e+00> : vector<16x64xf32>
    %32 = tpu.matmul %29, %31, %cst_26 {dimension_numbers = #tpu.dot_dimension_numbers<[1], [0], [0], [1], [0, 0, 1, 1], [], []>} : vector<16x64xf32>, vector<64x64xf32>, vector<16x64xf32> -> vector<16x64xf32>
    %33 = arith.addf %27, %32 : vector<16x64xf32>
    %34 = arith.truncf %29 : vector<16x64xf32> to vector<16x64xbf16>
    %cst_27 = arith.constant dense<0.000000e+00> : vector<16x64xf32>
    %35 = tpu.matmul %0, %34, %cst_27 {dimension_numbers = #tpu.dot_dimension_numbers<[1], [0], [0], [1], [0, 0, 1, 1], [], []>} : vector<16x16xbf16>, vector<16x64xbf16>, vector<16x64xf32> -> vector<16x64xf32>
    %cst_28 = arith.constant 2.000000e+00 : f32
    %36 = vector.broadcast %cst_28 : f32 to vector<16x64xf32>
    %37 = arith.mulf %36, %35 : vector<16x64xf32>
    %38 = arith.subf %37, %24 : vector<16x64xf32>
    %c2_29 = arith.constant 2 : index
    %c0_30 = arith.constant 0 : index
    %c0_31 = arith.constant 0 : index
    %39 = vector.load %arg5[%c2_29, %c0_30, %c0_31] : memref<3x64x64xf32, #tpu.memory_space<vmem>>, vector<1x64x64xf32>
    %40 = vector.shape_cast %39 : vector<1x64x64xf32> to vector<64x64xf32>
    %cst_32 = arith.constant dense<0.000000e+00> : vector<16x64xf32>
    %41 = tpu.matmul %38, %40, %cst_32 {dimension_numbers = #tpu.dot_dimension_numbers<[1], [0], [0], [1], [0, 0, 1, 1], [], []>} : vector<16x64xf32>, vector<64x64xf32>, vector<16x64xf32> -> vector<16x64xf32>
    %42 = arith.addf %33, %41 : vector<16x64xf32>
    %c0_33 = arith.constant 0 : index
    %c0_34 = arith.constant 0 : index
    %43 = vector.load %arg6[%c0_33, %c0_34] : memref<1x64xf32, #tpu.memory_space<vmem>>, vector<1x64xf32>
    %44 = vector.broadcast %43 : vector<1x64xf32> to vector<16x64xf32>
    %45 = arith.addf %42, %44 : vector<16x64xf32>
    %cst_35 = arith.constant 0.000000e+00 : f32
    %46 = vector.broadcast %cst_35 : f32 to vector<16x64xf32>
    %47 = arith.maximumf %45, %46 : vector<16x64xf32>
    %c0_36 = arith.constant 0 : index
    %c0_37 = arith.constant 0 : index
    %c0_38 = arith.constant 0 : index
    %48 = vector.load %arg7[%c0_36, %c0_37, %c0_38] : memref<3x64x128xf32, #tpu.memory_space<vmem>>, vector<1x64x128xf32>
    %49 = vector.shape_cast %48 : vector<1x64x128xf32> to vector<64x128xf32>
    %cst_39 = arith.constant dense<0.000000e+00> : vector<16x128xf32>
    %50 = tpu.matmul %47, %49, %cst_39 {dimension_numbers = #tpu.dot_dimension_numbers<[1], [0], [0], [1], [0, 0, 1, 1], [], []>} : vector<16x64xf32>, vector<64x128xf32>, vector<16x128xf32> -> vector<16x128xf32>
    %51 = arith.truncf %47 : vector<16x64xf32> to vector<16x64xbf16>
    %cst_40 = arith.constant dense<0.000000e+00> : vector<16x64xf32>
    %52 = tpu.matmul %0, %51, %cst_40 {dimension_numbers = #tpu.dot_dimension_numbers<[1], [0], [0], [1], [0, 0, 1, 1], [], []>} : vector<16x16xbf16>, vector<16x64xbf16>, vector<16x64xf32> -> vector<16x64xf32>
    %c1_41 = arith.constant 1 : index
    %c0_42 = arith.constant 0 : index
    %c0_43 = arith.constant 0 : index
    %53 = vector.load %arg7[%c1_41, %c0_42, %c0_43] : memref<3x64x128xf32, #tpu.memory_space<vmem>>, vector<1x64x128xf32>
    %54 = vector.shape_cast %53 : vector<1x64x128xf32> to vector<64x128xf32>
    %cst_44 = arith.constant dense<0.000000e+00> : vector<16x128xf32>
    %55 = tpu.matmul %52, %54, %cst_44 {dimension_numbers = #tpu.dot_dimension_numbers<[1], [0], [0], [1], [0, 0, 1, 1], [], []>} : vector<16x64xf32>, vector<64x128xf32>, vector<16x128xf32> -> vector<16x128xf32>
    %56 = arith.addf %50, %55 : vector<16x128xf32>
    %57 = arith.truncf %52 : vector<16x64xf32> to vector<16x64xbf16>
    %cst_45 = arith.constant dense<0.000000e+00> : vector<16x64xf32>
    %58 = tpu.matmul %0, %57, %cst_45 {dimension_numbers = #tpu.dot_dimension_numbers<[1], [0], [0], [1], [0, 0, 1, 1], [], []>} : vector<16x16xbf16>, vector<16x64xbf16>, vector<16x64xf32> -> vector<16x64xf32>
    %cst_46 = arith.constant 2.000000e+00 : f32
    %59 = vector.broadcast %cst_46 : f32 to vector<16x64xf32>
    %60 = arith.mulf %59, %58 : vector<16x64xf32>
    %61 = arith.subf %60, %47 : vector<16x64xf32>
    %c2_47 = arith.constant 2 : index
    %c0_48 = arith.constant 0 : index
    %c0_49 = arith.constant 0 : index
    %62 = vector.load %arg7[%c2_47, %c0_48, %c0_49] : memref<3x64x128xf32, #tpu.memory_space<vmem>>, vector<1x64x128xf32>
    %63 = vector.shape_cast %62 : vector<1x64x128xf32> to vector<64x128xf32>
    %cst_50 = arith.constant dense<0.000000e+00> : vector<16x128xf32>
    %64 = tpu.matmul %61, %63, %cst_50 {dimension_numbers = #tpu.dot_dimension_numbers<[1], [0], [0], [1], [0, 0, 1, 1], [], []>} : vector<16x64xf32>, vector<64x128xf32>, vector<16x128xf32> -> vector<16x128xf32>
    %65 = arith.addf %56, %64 : vector<16x128xf32>
    %c0_51 = arith.constant 0 : index
    %c0_52 = arith.constant 0 : index
    %66 = vector.load %arg8[%c0_51, %c0_52] : memref<1x128xf32, #tpu.memory_space<vmem>>, vector<1x128xf32>
    %67 = vector.broadcast %66 : vector<1x128xf32> to vector<16x128xf32>
    %68 = arith.addf %65, %67 : vector<16x128xf32>
    %cst_53 = arith.constant 0.000000e+00 : f32
    %69 = vector.broadcast %cst_53 : f32 to vector<16x128xf32>
    %70 = arith.maximumf %68, %69 : vector<16x128xf32>
    %c0_54 = arith.constant 0 : index
    %c0_55 = arith.constant 0 : index
    %71 = vector.load %arg2[%c0_54, %c0_55] : memref<2x16xf32, #tpu.memory_space<vmem>>, vector<2x16xf32>
    %cst_56 = arith.constant dense<0.000000e+00> : vector<2x128xf32>
    %72 = tpu.matmul %71, %70, %cst_56 {dimension_numbers = #tpu.dot_dimension_numbers<[1], [0], [0], [1], [0, 0, 1, 1], [], []>} : vector<2x16xf32>, vector<16x128xf32>, vector<2x128xf32> -> vector<2x128xf32>
    %c0_57 = arith.constant 0 : index
    %c0_58 = arith.constant 0 : index
    %73 = vector.load %arg9[%c0_57, %c0_58] : memref<128x128xf32, #tpu.memory_space<vmem>>, vector<128x128xf32>
    %cst_59 = arith.constant dense<0.000000e+00> : vector<2x128xf32>
    %74 = tpu.matmul %72, %73, %cst_59 {dimension_numbers = #tpu.dot_dimension_numbers<[1], [0], [0], [1], [0, 0, 1, 1], [], []>} : vector<2x128xf32>, vector<128x128xf32>, vector<2x128xf32> -> vector<2x128xf32>
    %c0_60 = arith.constant 0 : index
    %c0_61 = arith.constant 0 : index
    %75 = vector.load %arg10[%c0_60, %c0_61] : memref<1x128xf32, #tpu.memory_space<vmem>>, vector<1x128xf32>
    %76 = vector.broadcast %75 : vector<1x128xf32> to vector<2x128xf32>
    %77 = arith.addf %74, %76 : vector<2x128xf32>
    %c0_62 = arith.constant 0 : index
    %c0_63 = arith.constant 0 : index
    %78 = vector.load %arg11[%c0_62, %c0_63] : memref<2x128xf32, #tpu.memory_space<vmem>>, vector<2x128xf32>
    tpu.vector_store %arg11[%c0_62, %c0_63], %77 {strides = array<i32>} : memref<2x128xf32, #tpu.memory_space<vmem>>, vector<2x128xf32>,
    return
  }
}

</mosaic_0001>

<llo_original>
// kernel: gcn_forward.1
$region0: #{gcn_forward.1}
  #allocation0 [shape = 'u32[]', space=smem, size = 0x4, offset = 0x4, fixed_abs, tag = 'smem constant byte address 0x4 - core index']
  #allocation1 [shape = 'u32[144,128]{1,0:T(1,128)}', space=vmem, size = 0x12000, scoped, tag = 'internal scratch']
  %s0 = inlined_call_operand.vmem [shape: bf16[16,16], index: 0, kind: input, shape index: {}]
  %s1 = inlined_call_operand.vmem [shape: f32[16,8], index: 1, kind: input, shape index: {}]
  %s2 = inlined_call_operand.vmem [shape: f32[2,16], index: 2, kind: input, shape index: {}]
  %s3 = inlined_call_operand.vmem [shape: f32[3,8,64], index: 3, kind: input, shape index: {}]
  %s4 = inlined_call_operand.vmem [shape: f32[1,64], index: 4, kind: input, shape index: {}]
  %s5 = inlined_call_operand.vmem [shape: f32[3,64,64], index: 5, kind: input, shape index: {}]
  %s6 = inlined_call_operand.vmem [shape: f32[1,64], index: 6, kind: input, shape index: {}]
  %s7 = inlined_call_operand.vmem [shape: f32[3,64,128], index: 7, kind: input, shape index: {}]
  %s8 = inlined_call_operand.vmem [shape: f32[1,128], index: 8, kind: input, shape index: {}]
  %s9 = inlined_call_operand.vmem [shape: f32[128,128], index: 9, kind: input, shape index: {}]
  %s10 = inlined_call_operand.vmem [shape: f32[1,128], index: 10, kind: input, shape index: {}]
  %s11 = inlined_call_operand.hbm [shape: f32[2,128], index: 11, kind: output, shape index: {}]
  %s12 = sld [smem:[#allocation0]]
  $region54: #{gcn_forward.1} parent=0
    _
  %s14 = ssub.s32 1, %s12
  %s15 = scalar_select 0, %s14, %s12
  $region1: #{gcn_forward.1} parent=0
    #allocation2 [shape = 'u8[1024]{0}', space=vmem, size = 0x400, scoped, tag = 'output window, operand 0, single buffered']
    #allocation3 [shape = 's32[1]{0}', space=sflag, size = 0x4, scoped, tag = 'scoped memory for gcn_forward.1']
    %16 = vsyncpa [#allocation3], 0
    // Predicated region
    $region2: #{gcn_forward.1} parent=1 // pred_check
      _
    $region3: #{gcn_forward.1} parent=1 // pred_check_branch
      %18 = sbr.rel (0) target = $region5
    $region4: #{gcn_forward.1} parent=1 // pred_region
      _
    $region5: #{gcn_forward.1} parent=1 // pred_fallthru
      _
    // Predicated region
    $region6: #{gcn_forward.1} parent=1 // pred_check
      _
    $region7: #{gcn_forward.1} parent=1 // pred_check_branch
      %20 = sbr.rel (0) target = $region9
    $region8: #{gcn_forward.1} parent=1 // pred_region
      _
    $region9: #{gcn_forward.1} parent=1 // pred_fallthru
      _
    // Predicated region
    $region10: #{gcn_forward.1} parent=1 // pred_check
      _
    $region11: #{gcn_forward.1} parent=1 // pred_check_branch
      %22 = sbr.rel (0) target = $region13
    $region12: #{gcn_forward.1} parent=1 // pred_region
      _
    $region13: #{gcn_forward.1} parent=1 // pred_fallthru
      _
    // Predicated region
    $region14: #{gcn_forward.1} parent=1 // pred_check
      _
    $region15: #{gcn_forward.1} parent=1 // pred_check_branch
      %24 = sbr.rel (0) target = $region17
    $region16: #{gcn_forward.1} parent=1 // pred_region
      _
    $region17: #{gcn_forward.1} parent=1 // pred_fallthru
      _
    // Predicated region
    $region18: #{gcn_forward.1} parent=1 // pred_check
      _
    $region19: #{gcn_forward.1} parent=1 // pred_check_branch
      %26 = sbr.rel (0) target = $region21
    $region20: #{gcn_forward.1} parent=1 // pred_region
      _
    $region21: #{gcn_forward.1} parent=1 // pred_fallthru
      _
    // Predicated region
    $region22: #{gcn_forward.1} parent=1 // pred_check
      _
    $region23: #{gcn_forward.1} parent=1 // pred_check_branch
      %28 = sbr.rel (0) target = $region25
    $region24: #{gcn_forward.1} parent=1 // pred_region
      _
    $region25: #{gcn_forward.1} parent=1 // pred_fallthru
      _
    // Predicated region
    $region26: #{gcn_forward.1} parent=1 // pred_check
      _
    $region27: #{gcn_forward.1} parent=1 // pred_check_branch
      %30 = sbr.rel (0) target = $region29
    $region28: #{gcn_forward.1} parent=1 // pred_region
      _
    $region29: #{gcn_forward.1} parent=1 // pred_fallthru
      _
    // Predicated region
    $region30: #{gcn_forward.1} parent=1 // pred_check
      _
    $region31: #{gcn_forward.1} parent=1 // pred_check_branch
      %32 = sbr.rel (0) target = $region33
    $region32: #{gcn_forward.1} parent=1 // pred_region
      _
    $region33: #{gcn_forward.1} parent=1 // pred_fallthru
      _
    // Predicated region
    $region34: #{gcn_forward.1} parent=1 // pred_check
      _
    $region35: #{gcn_forward.1} parent=1 // pred_check_branch
      %34 = sbr.rel (0) target = $region37
    $region36: #{gcn_forward.1} parent=1 // pred_region
      _
    $region37: #{gcn_forward.1} parent=1 // pred_fallthru
      _
    // Predicated region
    $region38: #{gcn_forward.1} parent=1 // pred_check
      _
    $region39: #{gcn_forward.1} parent=1 // pred_check_branch
      %36 = sbr.rel (0) target = $region41
    $region40: #{gcn_forward.1} parent=1 // pred_region
      _
    $region41: #{gcn_forward.1} parent=1 // pred_fallthru
      _
    // Predicated region
    $region42: #{gcn_forward.1} parent=1 // pred_check
      _
    $region43: #{gcn_forward.1} parent=1 // pred_check_branch
      %38 = sbr.rel (0) target = $region45
    $region44: #{gcn_forward.1} parent=1 // pred_region
      _
    $region45: #{gcn_forward.1} parent=1 // pred_fallthru
      _
    %v40 = vld [vmem:[%s0] sm:$0xf]
    %v41 = vld [vmem:[%s0 + $0x4] sm:$0xf]
    %v42 = vld [vmem:[%s1] sm:$0xff]
    %v43 = vld [vmem:[%s1 + $0x8] sm:$0xff]
    %v44 = vld [vmem:[%s3] sm:$0xff]
    %v45 = vpack.c.bf16 %v43, %v42
    %v48 = vunpack.c.l.b16 %v40
    %v49 = vunpack.c.l.b16 %v41
    %v50 = vpack.c.b16 %v49, %v48
    %vm51 = vcmask 130048
    %v53 = vsel %vm51, %v50, 0
    %55 = vmatprep.subr.bf16.mxu0 0
    %56 = vmatpush1.bf16.msra.mxu0 %v45
    %57 = vmatprep.subr.bf16.mxu0 0
    %58 = vmatpush1.bf16.msra.mxu0 0
    %59 = vmatprep.subr.bf16.mxu0 0
    %60 = vmatpush1.bf16.msra.mxu0 0
    %61 = vmatprep.subr.bf16.mxu0 0
    %62 = vmatpush1.bf16.msra.mxu0 0
    %63 = vmatprep.subr.bf16.mxu0 0
    %64 = vmatpush1.bf16.msra.mxu0 0
    %65 = vmatprep.subr.bf16.mxu0 0
    %66 = vmatpush1.bf16.msra.mxu0 0
    %67 = vmatprep.subr.bf16.mxu0 0
    %68 = vmatpush1.bf16.msra.mxu0 0
    %69 = vmatprep.subr.bf16.mxu0 0
    %70 = vmatpush1.bf16.msra.mxu0 0
    %71 = vmatprep.subr.bf16.mxu0 0
    %72 = vmatpush1.bf16.msra.mxu0 0
    %73 = vmatprep.subr.bf16.mxu0 0
    %74 = vmatpush1.bf16.msra.mxu0 0
    %75 = vmatprep.subr.bf16.mxu0 0
    %76 = vmatpush1.bf16.msra.mxu0 0
    %77 = vmatprep.subr.bf16.mxu0 0
    %78 = vmatpush1.bf16.msra.mxu0 0
    %79 = vmatprep.subr.bf16.mxu0 0
    %80 = vmatpush1.bf16.msra.mxu0 0
    %81 = vmatprep.subr.bf16.mxu0 0
    %82 = vmatpush1.bf16.msra.mxu0 0
    %83 = vmatprep.subr.bf16.mxu0 0
    %84 = vmatpush1.bf16.msra.mxu0 0
    %85 = vmatprep.subr.bf16.mxu0 0
    %86 = vmatpush1.bf16.msra.mxu0 0
    %87 = vmatprep.mubr.bf16.mxu0 0
    %88 = vmatmul.mubr.bf16.gmra.mrb[0].mxu0 %v53
    %v89 = vpop.f32.mrb[0].mxu0
    %v90 = vadd.f32 0.0, %v89
    %v91 = vpop.f32.mrb[0].mxu0
    %v92 = vpop.f32.mrb[0].mxu0
    %v93 = vadd.f32 0.0, %v92
    %v94 = vpop.f32.mrb[0].mxu0
    %95 = vdwg.mxu0
    %s96 = scalar_lea.vmem %s3, 8
    %v97 = vld [vmem:[%s96] sm:$0xff]
    %vm98 = vcmask 64512
    %v100 = vsel %vm98, %v90, 0
    %v103 = vsel %vm98, %v93, 0
    %105 = vmatprep.subr.mxu0 0.0
    %106 = vmatpush1.msra.mxu0 %v97
    %107 = vmatprep.subr.mxu0 0.0
    %108 = vmatpush1.msra.mxu0 0.0
    %109 = vmatprep.subr.mxu0 0.0
    %110 = vmatpush1.msra.mxu0 0.0
    %111 = vmatprep.subr.mxu0 0.0
    %112 = vmatpush1.msra.mxu0 0.0
    %113 = vmatprep.subr.mxu0 0.0
    %114 = vmatpush1.msra.mxu0 0.0
    %115 = vmatprep.subr.mxu0 0.0
    %116 = vmatpush1.msra.mxu0 0.0
    %117 = vmatprep.subr.mxu0 0.0
    %118 = vmatpush1.msra.mxu0 0.0
    %119 = vmatprep.subr.mxu0 0.0
    %120 = vmatpush1.msra.mxu0 0.0
    %121 = vmatprep.subr.mxu0 0.0
    %122 = vmatpush1.msra.mxu0 0.0
    %123 = vmatprep.subr.mxu0 0.0
    %124 = vmatpush1.msra.mxu0 0.0
    %125 = vmatprep.subr.mxu0 0.0
    %126 = vmatpush1.msra.mxu0 0.0
    %127 = vmatprep.subr.mxu0 0.0
    %128 = vmatpush1.msra.mxu0 0.0
    %129 = vmatprep.subr.mxu0 0.0
    %130 = vmatpush1.msra.mxu0 0.0
    %131 = vmatprep.subr.mxu0 0.0
    %132 = vmatpush1.msra.mxu0 0.0
    %133 = vmatprep.subr.mxu0 0.0
    %134 = vmatpush1.msra.mxu0 0.0
    %135 = vmatprep.subr.mxu0 0.0
    %136 = vmatpush1.msra.mxu0 0.0
    %137 = vmatprep.subr.mxu0 0.0
    %138 = vmatpush1.msra.mxu0 0.0
    %139 = vmatprep.subr.mxu0 0.0
    %140 = vmatpush1.msra.mxu0 0.0
    %141 = vmatprep.subr.mxu0 0.0
    %142 = vmatpush1.msra.mxu0 0.0
    %143 = vmatprep.subr.mxu0 0.0
    %144 = vmatpush1.msra.mxu0 0.0
    %145 = vmatprep.subr.mxu0 0.0
    %146 = vmatpush1.msra.mxu0 0.0
    %147 = vmatprep.subr.mxu0 0.0
    %148 = vmatpush1.msra.mxu0 0.0
    %149 = vmatprep.subr.mxu0 0.0
    %150 = vmatpush1.msra.mxu0 0.0
    %151 = vmatprep.subr.mxu0 0.0
    %152 = vmatpush1.msra.mxu0 0.0
    %153 = vmatprep.subr.mxu0 0.0
    %154 = vmatpush1.msra.mxu0 0.0
    %155 = vmatprep.subr.mxu0 0.0
    %156 = vmatpush1.msra.mxu0 0.0
    %157 = vmatprep.subr.mxu0 0.0
    %158 = vmatpush1.msra.mxu0 0.0
    %159 = vmatprep.subr.mxu0 0.0
    %160 = vmatpush1.msra.mxu0 0.0
    %161 = vmatprep.subr.mxu0 0.0
    %162 = vmatpush1.msra.mxu0 0.0
    %163 = vmatprep.subr.mxu0 0.0
    %164 = vmatpush1.msra.mxu0 0.0
    %165 = vmatprep.subr.mxu0 0.0
    %166 = vmatpush1.msra.mxu0 0.0
    %167 = vmatprep.subr.mxu0 0.0
    %168 = vmatpush1.msra.mxu0 0.0
    %169 = vmatprep.mubr.f32.mxu0 0.0
    %170 = vmatmul.mubr.f32.gmra.mrb[0].mxu0 %v100
    %v171 = vpop.f32.mrb[0].mxu0
    %v172 = vadd.f32 0.0, %v171
    %v173 = vpop.f32.mrb[0].mxu0
    %174 = vmatprep.mubr.f32.mxu0 0.0
    %175 = vmatmul.mubr.f32.gmra.mrb[0].mxu0 %v103
    %v176 = vpop.f32.mrb[0].mxu0
    %v177 = vadd.f32 0.0, %v176
    %v178 = vpop.f32.mrb[0].mxu0
    %179 = vdwg.mxu0
    %v181 = vsel %vm98, %v42, 0
    %v184 = vsel %vm98, %v43, 0
    %186 = vmatprep.subr.mxu0 0.0
    %187 = vmatpush1.msra.mxu0 %v44
    %188 = vmatprep.subr.mxu0 0.0
    %189 = vmatpush1.msra.mxu0 0.0
    %190 = vmatprep.subr.mxu0 0.0
    %191 = vmatpush1.msra.mxu0 0.0
    %192 = vmatprep.subr.mxu0 0.0
    %193 = vmatpush1.msra.mxu0 0.0
    %194 = vmatprep.subr.mxu0 0.0
    %195 = vmatpush1.msra.mxu0 0.0
    %196 = vmatprep.subr.mxu0 0.0
    %197 = vmatpush1.msra.mxu0 0.0
    %198 = vmatprep.subr.mxu0 0.0
    %199 = vmatpush1.msra.mxu0 0.0
    %200 = vmatprep.subr.mxu0 0.0
    %201 = vmatpush1.msra.mxu0 0.0
    %202 = vmatprep.subr.mxu0 0.0
    %203 = vmatpush1.msra.mxu0 0.0
    %204 = vmatprep.subr.mxu0 0.0
    %205 = vmatpush1.msra.mxu0 0.0
    %206 = vmatprep.subr.mxu0 0.0
    %207 = vmatpush1.msra.mxu0 0.0
    %208 = vmatprep.subr.mxu0 0.0
    %209 = vmatpush1.msra.mxu0 0.0
    %210 = vmatprep.subr.mxu0 0.0
    %211 = vmatpush1.msra.mxu0 0.0
    %212 = vmatprep.subr.mxu0 0.0
    %213 = vmatpush1.msra.mxu0 0.0
    %214 = vmatprep.subr.mxu0 0.0
    %215 = vmatpush1.msra.mxu0 0.0
    %216 = vmatprep.subr.mxu0 0.0
    %217 = vmatpush1.msra.mxu0 0.0
    %218 = vmatprep.subr.mxu0 0.0
    %219 = vmatpush1.msra.mxu0 0.0
    %220 = vmatprep.subr.mxu0 0.0
    %221 = vmatpush1.msra.mxu0 0.0
    %222 = vmatprep.subr.mxu0 0.0
    %223 = vmatpush1.msra.mxu0 0.0
    %224 = vmatprep.subr.mxu0 0.0
    %225 = vmatpush1.msra.mxu0 0.0
    %226 = vmatprep.subr.mxu0 0.0
    %227 = vmatpush1.msra.mxu0 0.0
    %228 = vmatprep.subr.mxu0 0.0
    %229 = vmatpush1.msra.mxu0 0.0
    %230 = vmatprep.subr.mxu0 0.0
    %231 = vmatpush1.msra.mxu0 0.0
    %232 = vmatprep.subr.mxu0 0.0
    %233 = vmatpush1.msra.mxu0 0.0
    %234 = vmatprep.subr.mxu0 0.0
    %235 = vmatpush1.msra.mxu0 0.0
    %236 = vmatprep.subr.mxu0 0.0
    %237 = vmatpush1.msra.mxu0 0.0
    %238 = vmatprep.subr.mxu0 0.0
    %239 = vmatpush1.msra.mxu0 0.0
    %240 = vmatprep.subr.mxu0 0.0
    %241 = vmatpush1.msra.mxu0 0.0
    %242 = vmatprep.subr.mxu0 0.0
    %243 = vmatpush1.msra.mxu0 0.0
    %244 = vmatprep.subr.mxu0 0.0
    %245 = vmatpush1.msra.mxu0 0.0
    %246 = vmatprep.subr.mxu0 0.0
    %247 = vmatpush1.msra.mxu0 0.0
    %248 = vmatprep.subr.mxu0 0.0
    %249 = vmatpush1.msra.mxu0 0.0
    %250 = vmatprep.mubr.f32.mxu0 0.0
    %251 = vmatmul.mubr.f32.gmra.mrb[0].mxu0 %v181
    %v252 = vpop.f32.mrb[0].mxu0
    %v253 = vadd.f32 %v172, %v252
    %v254 = vpop.f32.mrb[0].mxu0
    %255 = vmatprep.mubr.f32.mxu0 0.0
    %256 = vmatmul.mubr.f32.gmra.mrb[0].mxu0 %v184
    %v257 = vpop.f32.mrb[0].mxu0
    %v258 = vadd.f32 %v177, %v257
    %v259 = vpop.f32.mrb[0].mxu0
    %260 = vdwg.mxu0
    %v261 = vpack.c.bf16 %v93, %v90
    %262 = vmatprep.subr.bf16.mxu0 0
    %263 = vmatpush1.bf16.msra.mxu0 %v261
    %264 = vmatprep.subr.bf16.mxu0 0
    %265 = vmatpush1.bf16.msra.mxu0 0
    %266 = vmatprep.subr.bf16.mxu0 0
    %267 = vmatpush1.bf16.msra.mxu0 0
    %268 = vmatprep.subr.bf16.mxu0 0
    %269 = vmatpush1.bf16.msra.mxu0 0
    %270 = vmatprep.subr.bf16.mxu0 0
    %271 = vmatpush1.bf16.msra.mxu0 0
    %272 = vmatprep.subr.bf16.mxu0 0
    %273 = vmatpush1.bf16.msra.mxu0 0
    %274 = vmatprep.subr.bf16.mxu0 0
    %275 = vmatpush1.bf16.msra.mxu0 0
    %276 = vmatprep.subr.bf16.mxu0 0
    %277 = vmatpush1.bf16.msra.mxu0 0
    %278 = vmatprep.subr.bf16.mxu0 0
    %279 = vmatpush1.bf16.msra.mxu0 0
    %280 = vmatprep.subr.bf16.mxu0 0
    %281 = vmatpush1.bf16.msra.mxu0 0
    %282 = vmatprep.subr.bf16.mxu0 0
    %283 = vmatpush1.bf16.msra.mxu0 0
    %284 = vmatprep.subr.bf16.mxu0 0
    %285 = vmatpush1.bf16.msra.mxu0 0
    %286 = vmatprep.subr.bf16.mxu0 0
    %287 = vmatpush1.bf16.msra.mxu0 0
    %288 = vmatprep.subr.bf16.mxu0 0
    %289 = vmatpush1.bf16.msra.mxu0 0
    %290 = vmatprep.subr.bf16.mxu0 0
    %291 = vmatpush1.bf16.msra.mxu0 0
    %292 = vmatprep.subr.bf16.mxu0 0
    %293 = vmatpush1.bf16.msra.mxu0 0
    %294 = vmatprep.mubr.bf16.mxu0 0
    %295 = vmatmul.mubr.bf16.gmra.mrb[0].mxu0 %v53
    %v296 = vpop.f32.mrb[0].mxu0
    %v297 = vadd.f32 0.0, %v296
    %v298 = vpop.f32.mrb[0].mxu0
    %v299 = vpop.f32.mrb[0].mxu0
    %v300 = vadd.f32 0.0, %v299
    %v301 = vpop.f32.mrb[0].mxu0
    %302 = vdwg.mxu0
    %v303 = vmul.f32 %v297, 2.0
    %v304 = vmul.f32 %v300, 2.0
    %v305 = vsub.f32 %v303, %v42
    %v306 = vsub.f32 %v304, %v43
    %s307 = scalar_lea.vmem %s3, 16
    %v308 = vld [vmem:[%s307] sm:$0xff]
    %v310 = vsel %vm98, %v305, 0
    %v313 = vsel %vm98, %v306, 0
    %315 = vmatprep.subr.mxu0 0.0
    %316 = vmatpush1.msra.mxu0 %v308
    %317 = vmatprep.subr.mxu0 0.0
    %318 = vmatpush1.msra.mxu0 0.0
    %319 = vmatprep.subr.mxu0 0.0
    %320 = vmatpush1.msra.mxu0 0.0
    %321 = vmatprep.subr.mxu0 0.0
    %322 = vmatpush1.msra.mxu0 0.0
    %323 = vmatprep.subr.mxu0 0.0
    %324 = vmatpush1.msra.mxu0 0.0
    %325 = vmatprep.subr.mxu0 0.0
    %326 = vmatpush1.msra.mxu0 0.0
    %327 = vmatprep.subr.mxu0 0.0
    %328 = vmatpush1.msra.mxu0 0.0
    %329 = vmatprep.subr.mxu0 0.0
    %330 = vmatpush1.msra.mxu0 0.0
    %331 = vmatprep.subr.mxu0 0.0
    %332 = vmatpush1.msra.mxu0 0.0
    %333 = vmatprep.subr.mxu0 0.0
    %334 = vmatpush1.msra.mxu0 0.0
    %335 = vmatprep.subr.mxu0 0.0
    %336 = vmatpush1.msra.mxu0 0.0
    %337 = vmatprep.subr.mxu0 0.0
    %338 = vmatpush1.msra.mxu0 0.0
    %339 = vmatprep.subr.mxu0 0.0
    %340 = vmatpush1.msra.mxu0 0.0
    %341 = vmatprep.subr.mxu0 0.0
    %342 = vmatpush1.msra.mxu0 0.0
    %343 = vmatprep.subr.mxu0 0.0
    %344 = vmatpush1.msra.mxu0 0.0
    %345 = vmatprep.subr.mxu0 0.0
    %346 = vmatpush1.msra.mxu0 0.0
    %347 = vmatprep.subr.mxu0 0.0
    %348 = vmatpush1.msra.mxu0 0.0
    %349 = vmatprep.subr.mxu0 0.0
    %350 = vmatpush1.msra.mxu0 0.0
    %351 = vmatprep.subr.mxu0 0.0
    %352 = vmatpush1.msra.mxu0 0.0
    %353 = vmatprep.subr.mxu0 0.0
    %354 = vmatpush1.msra.mxu0 0.0
    %355 = vmatprep.subr.mxu0 0.0
    %356 = vmatpush1.msra.mxu0 0.0
    %357 = vmatprep.subr.mxu0 0.0
    %358 = vmatpush1.msra.mxu0 0.0
    %359 = vmatprep.subr.mxu0 0.0
    %360 = vmatpush1.msra.mxu0 0.0
    %361 = vmatprep.subr.mxu0 0.0
    %362 = vmatpush1.msra.mxu0 0.0
    %363 = vmatprep.subr.mxu0 0.0
    %364 = vmatpush1.msra.mxu0 0.0
    %365 = vmatprep.subr.mxu0 0.0
    %366 = vmatpush1.msra.mxu0 0.0
    %367 = vmatprep.subr.mxu0 0.0
    %368 = vmatpush1.msra.mxu0 0.0
    %369 = vmatprep.subr.mxu0 0.0
    %370 = vmatpush1.msra.mxu0 0.0
    %371 = vmatprep.subr.mxu0 0.0
    %372 = vmatpush1.msra.mxu0 0.0
    %373 = vmatprep.subr.mxu0 0.0
    %374 = vmatpush1.msra.mxu0 0.0
    %375 = vmatprep.subr.mxu0 0.0
    %376 = vmatpush1.msra.mxu0 0.0
    %377 = vmatprep.subr.mxu0 0.0
    %378 = vmatpush1.msra.mxu0 0.0
    %379 = vmatprep.mubr.f32.mxu0 0.0
    %380 = vmatmul.mubr.f32.gmra.mrb[0].mxu0 %v310
    %v381 = vpop.f32.mrb[0].mxu0
    %v382 = vadd.f32 0.0, %v381
    %v383 = vpop.f32.mrb[0].mxu0
    %384 = vmatprep.mubr.f32.mxu0 0.0
    %385 = vmatmul.mubr.f32.gmra.mrb[0].mxu0 %v313
    %v386 = vpop.f32.mrb[0].mxu0
    %v387 = vadd.f32 0.0, %v386
    %v388 = vpop.f32.mrb[0].mxu0
    %389 = vdwg.mxu0
    %v390 = vadd.f32 %v253, %v382
    %v391 = vadd.f32 %v258, %v387
    %v392 = vld [vmem:[%s4] sm:$0x1]
    %v394 = vlaneseq
    %v395 = vshrl.u32 %v394, 7
    %v396 = vsub.s32 0, %v395
    %v397 = vrot.slane %v392, %v396
    %v399 = vadd.f32 %v390, %v397
    %v400 = vadd.f32 %v391, %v397
    %v401 = vmax.f32 %v399, 0.0
    %v402 = vmax.f32 %v400, 0.0
    %v403 = vld [vmem:[%s5] sm:$0xff]
    %v404 = vld [vmem:[%s5 + $0x8] sm:$0xff]
    %v405 = vld [vmem:[%s5 + $0x10] sm:$0xff]
    %v406 = vld [vmem:[%s5 + $0x18] sm:$0xff]
    %v407 = vld [vmem:[%s5 + $0x20] sm:$0xff]
    %v408 = vld [vmem:[%s5 + $0x28] sm:$0xff]
    %v409 = vld [vmem:[%s5 + $0x30] sm:$0xff]
    %v410 = vld [vmem:[%s5 + $0x38] sm:$0xff]
    %v411 = vpack.c.bf16 %v402, %v401
    %412 = vmatprep.subr.bf16.mxu0 0
    %413 = vmatpush1.bf16.msra.mxu0 %v411
    %414 = vmatprep.subr.bf16.mxu0 0
    %415 = vmatpush1.bf16.msra.mxu0 0
    %416 = vmatprep.subr.bf16.mxu0 0
    %417 = vmatpush1.bf16.msra.mxu0 0
    %418 = vmatprep.subr.bf16.mxu0 0
    %419 = vmatpush1.bf16.msra.mxu0 0
    %420 = vmatprep.subr.bf16.mxu0 0
    %421 = vmatpush1.bf16.msra.mxu0 0
    %422 = vmatprep.subr.bf16.mxu0 0
    %423 = vmatpush1.bf16.msra.mxu0 0
    %424 = vmatprep.subr.bf16.mxu0 0
    %425 = vmatpush1.bf16.msra.mxu0 0
    %426 = vmatprep.subr.bf16.mxu0 0
    %427 = vmatpush1.bf16.msra.mxu0 0
    %428 = vmatprep.subr.bf16.mxu0 0
    %429 = vmatpush1.bf16.msra.mxu0 0
    %430 = vmatprep.subr.bf16.mxu0 0
    %431 = vmatpush1.bf16.msra.mxu0 0
    %432 = vmatprep.subr.bf16.mxu0 0
    %433 = vmatpush1.bf16.msra.mxu0 0
    %434 = vmatprep.subr.bf16.mxu0 0
    %435 = vmatpush1.bf16.msra.mxu0 0
    %436 = vmatprep.subr.bf16.mxu0 0
    %437 = vmatpush1.bf16.msra.mxu0 0
    %438 = vmatprep.subr.bf16.mxu0 0
    %439 = vmatpush1.bf16.msra.mxu0 0
    %440 = vmatprep.subr.bf16.mxu0 0
    %441 = vmatpush1.bf16.msra.mxu0 0
    %442 = vmatprep.subr.bf16.mxu0 0
    %443 = vmatpush1.bf16.msra.mxu0 0
    %444 = vmatprep.mubr.bf16.mxu0 0
    %445 = vmatmul.mubr.bf16.gmra.mrb[0].mxu0 %v53
    %v446 = vpop.f32.mrb[0].mxu0
    %v447 = vadd.f32 0.0, %v446
    %v448 = vpop.f32.mrb[0].mxu0
    %v449 = vpop.f32.mrb[0].mxu0
    %v450 = vadd.f32 0.0, %v449
    %v451 = vpop.f32.mrb[0].mxu0
    %452 = vdwg.mxu0
    %s453 = scalar_lea.vmem %s5, 64
    %v454 = vld [vmem:[%s453] sm:$0xff]
    %v455 = vld [vmem:[%s453 + $0x8] sm:$0xff]
    %v456 = vld [vmem:[%s453 + $0x10] sm:$0xff]
    %v457 = vld [vmem:[%s453 + $0x18] sm:$0xff]
    %v458 = vld [vmem:[%s453 + $0x20] sm:$0xff]
    %v459 = vld [vmem:[%s453 + $0x28] sm:$0xff]
    %v460 = vld [vmem:[%s453 + $0x30] sm:$0xff]
    %v461 = vld [vmem:[%s453 + $0x38] sm:$0xff]
    %vm462 = vcmask 523264
    %v464 = vsel %vm462, %v447, 0
    %v467 = vsel %vm462, %v450, 0
    %469 = vmatprep.subr.mxu0 0.0
    %470 = vmatpush1.msra.mxu0 %v454
    %471 = vmatprep.subr.mxu0 0.0
    %472 = vmatpush1.msra.mxu0 %v455
    %473 = vmatprep.subr.mxu0 0.0
    %474 = vmatpush1.msra.mxu0 %v456
    %475 = vmatprep.subr.mxu0 0.0
    %476 = vmatpush1.msra.mxu0 %v457
    %477 = vmatprep.subr.mxu0 0.0
    %478 = vmatpush1.msra.mxu0 %v458
    %479 = vmatprep.subr.mxu0 0.0
    %480 = vmatpush1.msra.mxu0 %v459
    %481 = vmatprep.subr.mxu0 0.0
    %482 = vmatpush1.msra.mxu0 %v460
    %483 = vmatprep.subr.mxu0 0.0
    %484 = vmatpush1.msra.mxu0 %v461
    %485 = vmatprep.subr.mxu0 0.0
    %486 = vmatpush1.msra.mxu0 0.0
    %487 = vmatprep.subr.mxu0 0.0
    %488 = vmatpush1.msra.mxu0 0.0
    %489 = vmatprep.subr.mxu0 0.0
    %490 = vmatpush1.msra.mxu0 0.0
    %491 = vmatprep.subr.mxu0 0.0
    %492 = vmatpush1.msra.mxu0 0.0
    %493 = vmatprep.subr.mxu0 0.0
    %494 = vmatpush1.msra.mxu0 0.0
    %495 = vmatprep.subr.mxu0 0.0
    %496 = vmatpush1.msra.mxu0 0.0
    %497 = vmatprep.subr.mxu0 0.0
    %498 = vmatpush1.msra.mxu0 0.0
    %499 = vmatprep.subr.mxu0 0.0
    %500 = vmatpush1.msra.mxu0 0.0
    %501 = vmatprep.subr.mxu0 0.0
    %502 = vmatpush1.msra.mxu0 0.0
    %503 = vmatprep.subr.mxu0 0.0
    %504 = vmatpush1.msra.mxu0 0.0
    %505 = vmatprep.subr.mxu0 0.0
    %506 = vmatpush1.msra.mxu0 0.0
    %507 = vmatprep.subr.mxu0 0.0
    %508 = vmatpush1.msra.mxu0 0.0
    %509 = vmatprep.subr.mxu0 0.0
    %510 = vmatpush1.msra.mxu0 0.0
    %511 = vmatprep.subr.mxu0 0.0
    %512 = vmatpush1.msra.mxu0 0.0
    %513 = vmatprep.subr.mxu0 0.0
    %514 = vmatpush1.msra.mxu0 0.0
    %515 = vmatprep.subr.mxu0 0.0
    %516 = vmatpush1.msra.mxu0 0.0
    %517 = vmatprep.subr.mxu0 0.0
    %518 = vmatpush1.msra.mxu0 0.0
    %519 = vmatprep.subr.mxu0 0.0
    %520 = vmatpush1.msra.mxu0 0.0
    %521 = vmatprep.subr.mxu0 0.0
    %522 = vmatpush1.msra.mxu0 0.0
    %523 = vmatprep.subr.mxu0 0.0
    %524 = vmatpush1.msra.mxu0 0.0
    %525 = vmatprep.subr.mxu0 0.0
    %526 = vmatpush1.msra.mxu0 0.0
    %527 = vmatprep.subr.mxu0 0.0
    %528 = vmatpush1.msra.mxu0 0.0
    %529 = vmatprep.subr.mxu0 0.0
    %530 = vmatpush1.msra.mxu0 0.0
    %531 = vmatprep.subr.mxu0 0.0
    %532 = vmatpush1.msra.mxu0 0.0
    %533 = vmatprep.mubr.f32.mxu0 0.0
    %534 = vmatmul.mubr.f32.gmra.mrb[0].mxu0 %v464
    %v535 = vpop.f32.mrb[0].mxu0
    %v536 = vadd.f32 0.0, %v535
    %v537 = vpop.f32.mrb[0].mxu0
    %538 = vmatprep.mubr.f32.mxu0 0.0
    %539 = vmatmul.mubr.f32.gmra.mrb[0].mxu0 %v467
    %v540 = vpop.f32.mrb[0].mxu0
    %v541 = vadd.f32 0.0, %v540
    %v542 = vpop.f32.mrb[0].mxu0
    %543 = vdwg.mxu0
    %v545 = vsel %vm462, %v401, 0
    %v548 = vsel %vm462, %v402, 0
    %550 = vmatprep.subr.mxu0 0.0
    %551 = vmatpush1.msra.mxu0 %v403
    %552 = vmatprep.subr.mxu0 0.0
    %553 = vmatpush1.msra.mxu0 %v404
    %554 = vmatprep.subr.mxu0 0.0
    %555 = vmatpush1.msra.mxu0 %v405
    %556 = vmatprep.subr.mxu0 0.0
    %557 = vmatpush1.msra.mxu0 %v406
    %558 = vmatprep.subr.mxu0 0.0
    %559 = vmatpush1.msra.mxu0 %v407
    %560 = vmatprep.subr.mxu0 0.0
    %561 = vmatpush1.msra.mxu0 %v408
    %562 = vmatprep.subr.mxu0 0.0
    %563 = vmatpush1.msra.mxu0 %v409
    %564 = vmatprep.subr.mxu0 0.0
    %565 = vmatpush1.msra.mxu0 %v410
    %566 = vmatprep.subr.mxu0 0.0
    %567 = vmatpush1.msra.mxu0 0.0
    %568 = vmatprep.subr.mxu0 0.0
    %569 = vmatpush1.msra.mxu0 0.0
    %570 = vmatprep.subr.mxu0 0.0
    %571 = vmatpush1.msra.mxu0 0.0
    %572 = vmatprep.subr.mxu0 0.0
    %573 = vmatpush1.msra.mxu0 0.0
    %574 = vmatprep.subr.mxu0 0.0
    %575 = vmatpush1.msra.mxu0 0.0
    %576 = vmatprep.subr.mxu0 0.0
    %577 = vmatpush1.msra.mxu0 0.0
    %578 = vmatprep.subr.mxu0 0.0
    %579 = vmatpush1.msra.mxu0 0.0
    %580 = vmatprep.subr.mxu0 0.0
    %581 = vmatpush1.msra.mxu0 0.0
    %582 = vmatprep.subr.mxu0 0.0
    %583 = vmatpush1.msra.mxu0 0.0
    %584 = vmatprep.subr.mxu0 0.0
    %585 = vmatpush1.msra.mxu0 0.0
    %586 = vmatprep.subr.mxu0 0.0
    %587 = vmatpush1.msra.mxu0 0.0
    %588 = vmatprep.subr.mxu0 0.0
    %589 = vmatpush1.msra.mxu0 0.0
    %590 = vmatprep.subr.mxu0 0.0
    %591 = vmatpush1.msra.mxu0 0.0
    %592 = vmatprep.subr.mxu0 0.0
    %593 = vmatpush1.msra.mxu0 0.0
    %594 = vmatprep.subr.mxu0 0.0
    %595 = vmatpush1.msra.mxu0 0.0
    %596 = vmatprep.subr.mxu0 0.0
    %597 = vmatpush1.msra.mxu0 0.0
    %598 = vmatprep.subr.mxu0 0.0
    %599 = vmatpush1.msra.mxu0 0.0
    %600 = vmatprep.subr.mxu0 0.0
    %601 = vmatpush1.msra.mxu0 0.0
    %602 = vmatprep.subr.mxu0 0.0
    %603 = vmatpush1.msra.mxu0 0.0
    %604 = vmatprep.subr.mxu0 0.0
    %605 = vmatpush1.msra.mxu0 0.0
    %606 = vmatprep.subr.mxu0 0.0
    %607 = vmatpush1.msra.mxu0 0.0
    %608 = vmatprep.subr.mxu0 0.0
    %609 = vmatpush1.msra.mxu0 0.0
    %610 = vmatprep.subr.mxu0 0.0
    %611 = vmatpush1.msra.mxu0 0.0
    %612 = vmatprep.subr.mxu0 0.0
    %613 = vmatpush1.msra.mxu0 0.0
    %614 = vmatprep.mubr.f32.mxu0 0.0
    %615 = vmatmul.mubr.f32.gmra.mrb[0].mxu0 %v545
    %v616 = vpop.f32.mrb[0].mxu0
    %v617 = vadd.f32 %v536, %v616
    %v618 = vpop.f32.mrb[0].mxu0
    %619 = vmatprep.mubr.f32.mxu0 0.0
    %620 = vmatmul.mubr.f32.gmra.mrb[0].mxu0 %v548
    %v621 = vpop.f32.mrb[0].mxu0
    %v622 = vadd.f32 %v541, %v621
    %v623 = vpop.f32.mrb[0].mxu0
    %624 = vdwg.mxu0
    %v625 = vpack.c.bf16 %v450, %v447
    %626 = vmatprep.subr.bf16.mxu0 0
    %627 = vmatpush1.bf16.msra.mxu0 %v625
    %628 = vmatprep.subr.bf16.mxu0 0
    %629 = vmatpush1.bf16.msra.mxu0 0
    %630 = vmatprep.subr.bf16.mxu0 0
    %631 = vmatpush1.bf16.msra.mxu0 0
    %632 = vmatprep.subr.bf16.mxu0 0
    %633 = vmatpush1.bf16.msra.mxu0 0
    %634 = vmatprep.subr.bf16.mxu0 0
    %635 = vmatpush1.bf16.msra.mxu0 0
    %636 = vmatprep.subr.bf16.mxu0 0
    %637 = vmatpush1.bf16.msra.mxu0 0
    %638 = vmatprep.subr.bf16.mxu0 0
    %639 = vmatpush1.bf16.msra.mxu0 0
    %640 = vmatprep.subr.bf16.mxu0 0
    %641 = vmatpush1.bf16.msra.mxu0 0
    %642 = vmatprep.subr.bf16.mxu0 0
    %643 = vmatpush1.bf16.msra.mxu0 0
    %644 = vmatprep.subr.bf16.mxu0 0
    %645 = vmatpush1.bf16.msra.mxu0 0
    %646 = vmatprep.subr.bf16.mxu0 0
    %647 = vmatpush1.bf16.msra.mxu0 0
    %648 = vmatprep.subr.bf16.mxu0 0
    %649 = vmatpush1.bf16.msra.mxu0 0
    %650 = vmatprep.subr.bf16.mxu0 0
    %651 = vmatpush1.bf16.msra.mxu0 0
    %652 = vmatprep.subr.bf16.mxu0 0
    %653 = vmatpush1.bf16.msra.mxu0 0
    %654 = vmatprep.subr.bf16.mxu0 0
    %655 = vmatpush1.bf16.msra.mxu0 0
    %656 = vmatprep.subr.bf16.mxu0 0
    %657 = vmatpush1.bf16.msra.mxu0 0
    %658 = vmatprep.mubr.bf16.mxu0 0
    %659 = vmatmul.mubr.bf16.gmra.mrb[0].mxu0 %v53
    %v660 = vpop.f32.mrb[0].mxu0
    %v661 = vadd.f32 0.0, %v660
    %v662 = vpop.f32.mrb[0].mxu0
    %v663 = vpop.f32.mrb[0].mxu0
    %v664 = vadd.f32 0.0, %v663
    %v665 = vpop.f32.mrb[0].mxu0
    %666 = vdwg.mxu0
    %v667 = vmul.f32 %v661, 2.0
    %v668 = vmul.f32 %v664, 2.0
    %v669 = vsub.f32 %v667, %v401
    %v670 = vsub.f32 %v668, %v402
    %s671 = scalar_lea.vmem %s5, 128
    %v672 = vld [vmem:[%s671] sm:$0xff]
    %v673 = vld [vmem:[%s671 + $0x8] sm:$0xff]
    %v674 = vld [vmem:[%s671 + $0x10] sm:$0xff]
    %v675 = vld [vmem:[%s671 + $0x18] sm:$0xff]
    %v676 = vld [vmem:[%s671 + $0x20] sm:$0xff]
    %v677 = vld [vmem:[%s671 + $0x28] sm:$0xff]
    %v678 = vld [vmem:[%s671 + $0x30] sm:$0xff]
    %v679 = vld [vmem:[%s671 + $0x38] sm:$0xff]
    %v681 = vsel %vm462, %v669, 0
    %v684 = vsel %vm462, %v670, 0
    %686 = vmatprep.subr.mxu0 0.0
    %687 = vmatpush1.msra.mxu0 %v672
    %688 = vmatprep.subr.mxu0 0.0
    %689 = vmatpush1.msra.mxu0 %v673
    %690 = vmatprep.subr.mxu0 0.0
    %691 = vmatpush1.msra.mxu0 %v674
    %692 = vmatprep.subr.mxu0 0.0
    %693 = vmatpush1.msra.mxu0 %v675
    %694 = vmatprep.subr.mxu0 0.0
    %695 = vmatpush1.msra.mxu0 %v676
    %696 = vmatprep.subr.mxu0 0.0
    %697 = vmatpush1.msra.mxu0 %v677
    %698 = vmatprep.subr.mxu0 0.0
    %699 = vmatpush1.msra.mxu0 %v678
    %700 = vmatprep.subr.mxu0 0.0
    %701 = vmatpush1.msra.mxu0 %v679
    %702 = vmatprep.subr.mxu0 0.0
    %703 = vmatpush1.msra.mxu0 0.0
    %704 = vmatprep.subr.mxu0 0.0
    %705 = vmatpush1.msra.mxu0 0.0
    %706 = vmatprep.subr.mxu0 0.0
    %707 = vmatpush1.msra.mxu0 0.0
    %708 = vmatprep.subr.mxu0 0.0
    %709 = vmatpush1.msra.mxu0 0.0
    %710 = vmatprep.subr.mxu0 0.0
    %711 = vmatpush1.msra.mxu0 0.0
    %712 = vmatprep.subr.mxu0 0.0
    %713 = vmatpush1.msra.mxu0 0.0
    %714 = vmatprep.subr.mxu0 0.0
    %715 = vmatpush1.msra.mxu0 0.0
    %716 = vmatprep.subr.mxu0 0.0
    %717 = vmatpush1.msra.mxu0 0.0
    %718 = vmatprep.subr.mxu0 0.0
    %719 = vmatpush1.msra.mxu0 0.0
    %720 = vmatprep.subr.mxu0 0.0
    %721 = vmatpush1.msra.mxu0 0.0
    %722 = vmatprep.subr.mxu0 0.0
    %723 = vmatpush1.msra.mxu0 0.0
    %724 = vmatprep.subr.mxu0 0.0
    %725 = vmatpush1.msra.mxu0 0.0
    %726 = vmatprep.subr.mxu0 0.0
    %727 = vmatpush1.msra.mxu0 0.0
    %728 = vmatprep.subr.mxu0 0.0
    %729 = vmatpush1.msra.mxu0 0.0
    %730 = vmatprep.subr.mxu0 0.0
    %731 = vmatpush1.msra.mxu0 0.0
    %732 = vmatprep.subr.mxu0 0.0
    %733 = vmatpush1.msra.mxu0 0.0
    %734 = vmatprep.subr.mxu0 0.0
    %735 = vmatpush1.msra.mxu0 0.0
    %736 = vmatprep.subr.mxu0 0.0
    %737 = vmatpush1.msra.mxu0 0.0
    %738 = vmatprep.subr.mxu0 0.0
    %739 = vmatpush1.msra.mxu0 0.0
    %740 = vmatprep.subr.mxu0 0.0
    %741 = vmatpush1.msra.mxu0 0.0
    %742 = vmatprep.subr.mxu0 0.0
    %743 = vmatpush1.msra.mxu0 0.0
    %744 = vmatprep.subr.mxu0 0.0
    %745 = vmatpush1.msra.mxu0 0.0
    %746 = vmatprep.subr.mxu0 0.0
    %747 = vmatpush1.msra.mxu0 0.0
    %748 = vmatprep.subr.mxu0 0.0
    %749 = vmatpush1.msra.mxu0 0.0
    %750 = vmatprep.mubr.f32.mxu0 0.0
    %751 = vmatmul.mubr.f32.gmra.mrb[0].mxu0 %v681
    %v752 = vpop.f32.mrb[0].mxu0
    %v753 = vadd.f32 0.0, %v752
    %v754 = vpop.f32.mrb[0].mxu0
    %755 = vmatprep.mubr.f32.mxu0 0.0
    %756 = vmatmul.mubr.f32.gmra.mrb[0].mxu0 %v684
    %v757 = vpop.f32.mrb[0].mxu0
    %v758 = vadd.f32 0.0, %v757
    %v759 = vpop.f32.mrb[0].mxu0
    %760 = vdwg.mxu0
    %v761 = vadd.f32 %v617, %v753
    %v762 = vadd.f32 %v622, %v758
    %v763 = vld [vmem:[%s6] sm:$0x1]
    %v765 = vlaneseq
    %v766 = vshrl.u32 %v765, 7
    %v767 = vsub.s32 0, %v766
    %v768 = vrot.slane %v763, %v767
    %v770 = vadd.f32 %v761, %v768
    %v771 = vadd.f32 %v762, %v768
    %v772 = vmax.f32 %v770, 0.0
    %v773 = vmax.f32 %v771, 0.0
    %v774 = vld [vmem:[%s7] sm:$0xff]
    %v775 = vld [vmem:[%s7 + $0x8] sm:$0xff]
    %v776 = vld [vmem:[%s7 + $0x10] sm:$0xff]
    %v777 = vld [vmem:[%s7 + $0x18] sm:$0xff]
    %v778 = vld [vmem:[%s7 + $0x20] sm:$0xff]
    %v779 = vld [vmem:[%s7 + $0x28] sm:$0xff]
    %v780 = vld [vmem:[%s7 + $0x30] sm:$0xff]
    %v781 = vld [vmem:[%s7 + $0x38] sm:$0xff]
    %v782 = vpack.c.bf16 %v773, %v772
    %783 = vmatprep.subr.bf16.mxu0 0
    %784 = vmatpush1.bf16.msra.mxu0 %v782
    %785 = vmatprep.subr.bf16.mxu0 0
    %786 = vmatpush1.bf16.msra.mxu0 0
    %787 = vmatprep.subr.bf16.mxu0 0
    %788 = vmatpush1.bf16.msra.mxu0 0
    %789 = vmatprep.subr.bf16.mxu0 0
    %790 = vmatpush1.bf16.msra.mxu0 0
    %791 = vmatprep.subr.bf16.mxu0 0
    %792 = vmatpush1.bf16.msra.mxu0 0
    %793 = vmatprep.subr.bf16.mxu0 0
    %794 = vmatpush1.bf16.msra.mxu0 0
    %795 = vmatprep.subr.bf16.mxu0 0
    %796 = vmatpush1.bf16.msra.mxu0 0
    %797 = vmatprep.subr.bf16.mxu0 0
    %798 = vmatpush1.bf16.msra.mxu0 0
    %799 = vmatprep.subr.bf16.mxu0 0
    %800 = vmatpush1.bf16.msra.mxu0 0
    %801 = vmatprep.subr.bf16.mxu0 0
    %802 = vmatpush1.bf16.msra.mxu0 0
    %803 = vmatprep.subr.bf16.mxu0 0
    %804 = vmatpush1.bf16.msra.mxu0 0
    %805 = vmatprep.subr.bf16.mxu0 0
    %806 = vmatpush1.bf16.msra.mxu0 0
    %807 = vmatprep.subr.bf16.mxu0 0
    %808 = vmatpush1.bf16.msra.mxu0 0
    %809 = vmatprep.subr.bf16.mxu0 0
    %810 = vmatpush1.bf16.msra.mxu0 0
    %811 = vmatprep.subr.bf16.mxu0 0
    %812 = vmatpush1.bf16.msra.mxu0 0
    %813 = vmatprep.subr.bf16.mxu0 0
    %814 = vmatpush1.bf16.msra.mxu0 0
    %815 = vmatprep.mubr.bf16.mxu0 0
    %816 = vmatmul.mubr.bf16.gmra.mrb[0].mxu0 %v53
    %v817 = vpop.f32.mrb[0].mxu0
    %v818 = vadd.f32 0.0, %v817
    %v819 = vpop.f32.mrb[0].mxu0
    %v820 = vpop.f32.mrb[0].mxu0
    %v821 = vadd.f32 0.0, %v820
    %v822 = vpop.f32.mrb[0].mxu0
    %823 = vdwg.mxu0
    %s824 = scalar_lea.vmem %s7, 64
    %v825 = vld [vmem:[%s824] sm:$0xff]
    %v826 = vld [vmem:[%s824 + $0x8] sm:$0xff]
    %v827 = vld [vmem:[%s824 + $0x10] sm:$0xff]
    %v828 = vld [vmem:[%s824 + $0x18] sm:$0xff]
    %v829 = vld [vmem:[%s824 + $0x20] sm:$0xff]
    %v830 = vld [vmem:[%s824 + $0x28] sm:$0xff]
    %v831 = vld [vmem:[%s824 + $0x30] sm:$0xff]
    %v832 = vld [vmem:[%s824 + $0x38] sm:$0xff]
    %v834 = vsel %vm462, %v818, 0
    %v837 = vsel %vm462, %v821, 0
    %839 = vmatprep.subr.mxu0 0.0
    %840 = vmatpush1.msra.mxu0 %v825
    %841 = vmatprep.subr.mxu0 0.0
    %842 = vmatpush1.msra.mxu0 %v826
    %843 = vmatprep.subr.mxu0 0.0
    %844 = vmatpush1.msra.mxu0 %v827
    %845 = vmatprep.subr.mxu0 0.0
    %846 = vmatpush1.msra.mxu0 %v828
    %847 = vmatprep.subr.mxu0 0.0
    %848 = vmatpush1.msra.mxu0 %v829
    %849 = vmatprep.subr.mxu0 0.0
    %850 = vmatpush1.msra.mxu0 %v830
    %851 = vmatprep.subr.mxu0 0.0
    %852 = vmatpush1.msra.mxu0 %v831
    %853 = vmatprep.subr.mxu0 0.0
    %854 = vmatpush1.msra.mxu0 %v832
    %855 = vmatprep.subr.mxu0 0.0
    %856 = vmatpush1.msra.mxu0 0.0
    %857 = vmatprep.subr.mxu0 0.0
    %858 = vmatpush1.msra.mxu0 0.0
    %859 = vmatprep.subr.mxu0 0.0
    %860 = vmatpush1.msra.mxu0 0.0
    %861 = vmatprep.subr.mxu0 0.0
    %862 = vmatpush1.msra.mxu0 0.0
    %863 = vmatprep.subr.mxu0 0.0
    %864 = vmatpush1.msra.mxu0 0.0
    %865 = vmatprep.subr.mxu0 0.0
    %866 = vmatpush1.msra.mxu0 0.0
    %867 = vmatprep.subr.mxu0 0.0
    %868 = vmatpush1.msra.mxu0 0.0
    %869 = vmatprep.subr.mxu0 0.0
    %870 = vmatpush1.msra.mxu0 0.0
    %871 = vmatprep.subr.mxu0 0.0
    %872 = vmatpush1.msra.mxu0 0.0
    %873 = vmatprep.subr.mxu0 0.0
    %874 = vmatpush1.msra.mxu0 0.0
    %875 = vmatprep.subr.mxu0 0.0
    %876 = vmatpush1.msra.mxu0 0.0
    %877 = vmatprep.subr.mxu0 0.0
    %878 = vmatpush1.msra.mxu0 0.0
    %879 = vmatprep.subr.mxu0 0.0
    %880 = vmatpush1.msra.mxu0 0.0
    %881 = vmatprep.subr.mxu0 0.0
    %882 = vmatpush1.msra.mxu0 0.0
    %883 = vmatprep.subr.mxu0 0.0
    %884 = vmatpush1.msra.mxu0 0.0
    %885 = vmatprep.subr.mxu0 0.0
    %886 = vmatpush1.msra.mxu0 0.0
    %887 = vmatprep.subr.mxu0 0.0
    %888 = vmatpush1.msra.mxu0 0.0
    %889 = vmatprep.subr.mxu0 0.0
    %890 = vmatpush1.msra.mxu0 0.0
    %891 = vmatprep.subr.mxu0 0.0
    %892 = vmatpush1.msra.mxu0 0.0
    %893 = vmatprep.subr.mxu0 0.0
    %894 = vmatpush1.msra.mxu0 0.0
    %895 = vmatprep.subr.mxu0 0.0
    %896 = vmatpush1.msra.mxu0 0.0
    %897 = vmatprep.subr.mxu0 0.0
    %898 = vmatpush1.msra.mxu0 0.0
    %899 = vmatprep.subr.mxu0 0.0
    %900 = vmatpush1.msra.mxu0 0.0
    %901 = vmatprep.subr.mxu0 0.0
    %902 = vmatpush1.msra.mxu0 0.0
    %903 = vmatprep.mubr.f32.mxu0 0.0
    %904 = vmatmul.mubr.f32.gmra.mrb[0].mxu0 %v834
    %v905 = vpop.f32.mrb[0].mxu0
    %v906 = vadd.f32 0.0, %v905
    %v907 = vpop.f32.mrb[0].mxu0
    %908 = vmatprep.mubr.f32.mxu0 0.0
    %909 = vmatmul.mubr.f32.gmra.mrb[0].mxu0 %v837
    %v910 = vpop.f32.mrb[0].mxu0
    %v911 = vadd.f32 0.0, %v910
    %v912 = vpop.f32.mrb[0].mxu0
    %913 = vdwg.mxu0
    %v915 = vsel %vm462, %v772, 0
    %v918 = vsel %vm462, %v773, 0
    %920 = vmatprep.subr.mxu0 0.0
    %921 = vmatpush1.msra.mxu0 %v774
    %922 = vmatprep.subr.mxu0 0.0
    %923 = vmatpush1.msra.mxu0 %v775
    %924 = vmatprep.subr.mxu0 0.0
    %925 = vmatpush1.msra.mxu0 %v776
    %926 = vmatprep.subr.mxu0 0.0
    %927 = vmatpush1.msra.mxu0 %v777
    %928 = vmatprep.subr.mxu0 0.0
    %929 = vmatpush1.msra.mxu0 %v778
    %930 = vmatprep.subr.mxu0 0.0
    %931 = vmatpush1.msra.mxu0 %v779
    %932 = vmatprep.subr.mxu0 0.0
    %933 = vmatpush1.msra.mxu0 %v780
    %934 = vmatprep.subr.mxu0 0.0
    %935 = vmatpush1.msra.mxu0 %v781
    %936 = vmatprep.subr.mxu0 0.0
    %937 = vmatpush1.msra.mxu0 0.0
    %938 = vmatprep.subr.mxu0 0.0
    %939 = vmatpush1.msra.mxu0 0.0
    %940 = vmatprep.subr.mxu0 0.0
    %941 = vmatpush1.msra.mxu0 0.0
    %942 = vmatprep.subr.mxu0 0.0
    %943 = vmatpush1.msra.mxu0 0.0
    %944 = vmatprep.subr.mxu0 0.0
    %945 = vmatpush1.msra.mxu0 0.0
    %946 = vmatprep.subr.mxu0 0.0
    %947 = vmatpush1.msra.mxu0 0.0
    %948 = vmatprep.subr.mxu0 0.0
    %949 = vmatpush1.msra.mxu0 0.0
    %950 = vmatprep.subr.mxu0 0.0
    %951 = vmatpush1.msra.mxu0 0.0
    %952 = vmatprep.subr.mxu0 0.0
    %953 = vmatpush1.msra.mxu0 0.0
    %954 = vmatprep.subr.mxu0 0.0
    %955 = vmatpush1.msra.mxu0 0.0
    %956 = vmatprep.subr.mxu0 0.0
    %957 = vmatpush1.msra.mxu0 0.0
    %958 = vmatprep.subr.mxu0 0.0
    %959 = vmatpush1.msra.mxu0 0.0
    %960 = vmatprep.subr.mxu0 0.0
    %961 = vmatpush1.msra.mxu0 0.0
    %962 = vmatprep.subr.mxu0 0.0
    %963 = vmatpush1.msra.mxu0 0.0
    %964 = vmatprep.subr.mxu0 0.0
    %965 = vmatpush1.msra.mxu0 0.0
    %966 = vmatprep.subr.mxu0 0.0
    %967 = vmatpush1.msra.mxu0 0.0
    %968 = vmatprep.subr.mxu0 0.0
    %969 = vmatpush1.msra.mxu0 0.0
    %970 = vmatprep.subr.mxu0 0.0
    %971 = vmatpush1.msra.mxu0 0.0
    %972 = vmatprep.subr.mxu0 0.0
    %973 = vmatpush1.msra.mxu0 0.0
    %974 = vmatprep.subr.mxu0 0.0
    %975 = vmatpush1.msra.mxu0 0.0
    %976 = vmatprep.subr.mxu0 0.0
    %977 = vmatpush1.msra.mxu0 0.0
    %978 = vmatprep.subr.mxu0 0.0
    %979 = vmatpush1.msra.mxu0 0.0
    %980 = vmatprep.subr.mxu0 0.0
    %981 = vmatpush1.msra.mxu0 0.0
    %982 = vmatprep.subr.mxu0 0.0
    %983 = vmatpush1.msra.mxu0 0.0
    %984 = vmatprep.mubr.f32.mxu0 0.0
    %985 = vmatmul.mubr.f32.gmra.mrb[0].mxu0 %v915
    %v986 = vpop.f32.mrb[0].mxu0
    %v987 = vadd.f32 %v906, %v986
    %v988 = vpop.f32.mrb[0].mxu0
    %989 = vmatprep.mubr.f32.mxu0 0.0
    %990 = vmatmul.mubr.f32.gmra.mrb[0].mxu0 %v918
    %v991 = vpop.f32.mrb[0].mxu0
    %v992 = vadd.f32 %v911, %v991
    %v993 = vpop.f32.mrb[0].mxu0
    %994 = vdwg.mxu0
    %v995 = vpack.c.bf16 %v821, %v818
    %996 = vmatprep.subr.bf16.mxu0 0
    %997 = vmatpush1.bf16.msra.mxu0 %v995
    %998 = vmatprep.subr.bf16.mxu0 0
    %999 = vmatpush1.bf16.msra.mxu0 0
    %1000 = vmatprep.subr.bf16.mxu0 0
    %1001 = vmatpush1.bf16.msra.mxu0 0
    %1002 = vmatprep.subr.bf16.mxu0 0
    %1003 = vmatpush1.bf16.msra.mxu0 0
    %1004 = vmatprep.subr.bf16.mxu0 0
    %1005 = vmatpush1.bf16.msra.mxu0 0
    %1006 = vmatprep.subr.bf16.mxu0 0
    %1007 = vmatpush1.bf16.msra.mxu0 0
    %1008 = vmatprep.subr.bf16.mxu0 0
    %1009 = vmatpush1.bf16.msra.mxu0 0
    %1010 = vmatprep.subr.bf16.mxu0 0
    %1011 = vmatpush1.bf16.msra.mxu0 0
    %1012 = vmatprep.subr.bf16.mxu0 0
    %1013 = vmatpush1.bf16.msra.mxu0 0
    %1014 = vmatprep.subr.bf16.mxu0 0
    %1015 = vmatpush1.bf16.msra.mxu0 0
    %1016 = vmatprep.subr.bf16.mxu0 0
    %1017 = vmatpush1.bf16.msra.mxu0 0
    %1018 = vmatprep.subr.bf16.mxu0 0
    %1019 = vmatpush1.bf16.msra.mxu0 0
    %1020 = vmatprep.subr.bf16.mxu0 0
    %1021 = vmatpush1.bf16.msra.mxu0 0
    %1022 = vmatprep.subr.bf16.mxu0 0
    %1023 = vmatpush1.bf16.msra.mxu0 0
    %1024 = vmatprep.subr.bf16.mxu0 0
    %1025 = vmatpush1.bf16.msra.mxu0 0
    %1026 = vmatprep.subr.bf16.mxu0 0
    %1027 = vmatpush1.bf16.msra.mxu0 0
    %1028 = vmatprep.mubr.bf16.mxu0 0
    %1029 = vmatmul.mubr.bf16.gmra.mrb[0].mxu0 %v53
    %v1030 = vpop.f32.mrb[0].mxu0
    %v1031 = vadd.f32 0.0, %v1030
    %v1032 = vpop.f32.mrb[0].mxu0
    %v1033 = vpop.f32.mrb[0].mxu0
    %v1034 = vadd.f32 0.0, %v1033
    %v1035 = vpop.f32.mrb[0].mxu0
    %1036 = vdwg.mxu0
    %v1037 = vmul.f32 %v1031, 2.0
    %v1038 = vmul.f32 %v1034, 2.0
    %v1039 = vsub.f32 %v1037, %v772
    %v1040 = vsub.f32 %v1038, %v773
    %s1041 = scalar_lea.vmem %s7, 128
    %v1042 = vld [vmem:[%s1041] sm:$0xff]
    %v1043 = vld [vmem:[%s1041 + $0x8] sm:$0xff]
    %v1044 = vld [vmem:[%s1041 + $0x10] sm:$0xff]
    %v1045 = vld [vmem:[%s1041 + $0x18] sm:$0xff]
    %v1046 = vld [vmem:[%s1041 + $0x20] sm:$0xff]
    %v1047 = vld [vmem:[%s1041 + $0x28] sm:$0xff]
    %v1048 = vld [vmem:[%s1041 + $0x30] sm:$0xff]
    %v1049 = vld [vmem:[%s1041 + $0x38] sm:$0xff]
    %v1051 = vsel %vm462, %v1039, 0
    %v1054 = vsel %vm462, %v1040, 0
    %1056 = vmatprep.subr.mxu0 0.0
    %1057 = vmatpush1.msra.mxu0 %v1042
    %1058 = vmatprep.subr.mxu0 0.0
    %1059 = vmatpush1.msra.mxu0 %v1043
    %1060 = vmatprep.subr.mxu0 0.0
    %1061 = vmatpush1.msra.mxu0 %v1044
    %1062 = vmatprep.subr.mxu0 0.0
    %1063 = vmatpush1.msra.mxu0 %v1045
    %1064 = vmatprep.subr.mxu0 0.0
    %1065 = vmatpush1.msra.mxu0 %v1046
    %1066 = vmatprep.subr.mxu0 0.0
    %1067 = vmatpush1.msra.mxu0 %v1047
    %1068 = vmatprep.subr.mxu0 0.0
    %1069 = vmatpush1.msra.mxu0 %v1048
    %1070 = vmatprep.subr.mxu0 0.0
    %1071 = vmatpush1.msra.mxu0 %v1049
    %1072 = vmatprep.subr.mxu0 0.0
    %1073 = vmatpush1.msra.mxu0 0.0
    %1074 = vmatprep.subr.mxu0 0.0
    %1075 = vmatpush1.msra.mxu0 0.0
    %1076 = vmatprep.subr.mxu0 0.0
    %1077 = vmatpush1.msra.mxu0 0.0
    %1078 = vmatprep.subr.mxu0 0.0
    %1079 = vmatpush1.msra.mxu0 0.0
    %1080 = vmatprep.subr.mxu0 0.0
    %1081 = vmatpush1.msra.mxu0 0.0
    %1082 = vmatprep.subr.mxu0 0.0
    %1083 = vmatpush1.msra.mxu0 0.0
    %1084 = vmatprep.subr.mxu0 0.0
    %1085 = vmatpush1.msra.mxu0 0.0
    %1086 = vmatprep.subr.mxu0 0.0
    %1087 = vmatpush1.msra.mxu0 0.0
    %1088 = vmatprep.subr.mxu0 0.0
    %1089 = vmatpush1.msra.mxu0 0.0
    %1090 = vmatprep.subr.mxu0 0.0
    %1091 = vmatpush1.msra.mxu0 0.0
    %1092 = vmatprep.subr.mxu0 0.0
    %1093 = vmatpush1.msra.mxu0 0.0
    %1094 = vmatprep.subr.mxu0 0.0
    %1095 = vmatpush1.msra.mxu0 0.0
    %1096 = vmatprep.subr.mxu0 0.0
    %1097 = vmatpush1.msra.mxu0 0.0
    %1098 = vmatprep.subr.mxu0 0.0
    %1099 = vmatpush1.msra.mxu0 0.0
    %1100 = vmatprep.subr.mxu0 0.0
    %1101 = vmatpush1.msra.mxu0 0.0
    %1102 = vmatprep.subr.mxu0 0.0
    %1103 = vmatpush1.msra.mxu0 0.0
    %1104 = vmatprep.subr.mxu0 0.0
    %1105 = vmatpush1.msra.mxu0 0.0
    %1106 = vmatprep.subr.mxu0 0.0
    %1107 = vmatpush1.msra.mxu0 0.0
    %1108 = vmatprep.subr.mxu0 0.0
    %1109 = vmatpush1.msra.mxu0 0.0
    %1110 = vmatprep.subr.mxu0 0.0
    %1111 = vmatpush1.msra.mxu0 0.0
    %1112 = vmatprep.subr.mxu0 0.0
    %1113 = vmatpush1.msra.mxu0 0.0
    %1114 = vmatprep.subr.mxu0 0.0
    %1115 = vmatpush1.msra.mxu0 0.0
    %1116 = vmatprep.subr.mxu0 0.0
    %1117 = vmatpush1.msra.mxu0 0.0
    %1118 = vmatprep.subr.mxu0 0.0
    %1119 = vmatpush1.msra.mxu0 0.0
    %1120 = vmatprep.mubr.f32.mxu0 0.0
    %1121 = vmatmul.mubr.f32.gmra.mrb[0].mxu0 %v1051
    %v1122 = vpop.f32.mrb[0].mxu0
    %v1123 = vadd.f32 0.0, %v1122
    %v1124 = vpop.f32.mrb[0].mxu0
    %1125 = vmatprep.mubr.f32.mxu0 0.0
    %1126 = vmatmul.mubr.f32.gmra.mrb[0].mxu0 %v1054
    %v1127 = vpop.f32.mrb[0].mxu0
    %v1128 = vadd.f32 0.0, %v1127
    %v1129 = vpop.f32.mrb[0].mxu0
    %1130 = vdwg.mxu0
    %v1131 = vadd.f32 %v987, %v1123
    %v1132 = vadd.f32 %v992, %v1128
    %v1133 = vld [vmem:[%s8] sm:$0x1]
    %v1135 = vlaneseq
    %v1136 = vshrl.u32 %v1135, 7
    %v1137 = vsub.s32 0, %v1136
    %v1138 = vrot.slane %v1133, %v1137
    %v1140 = vadd.f32 %v1131, %v1138
    %v1141 = vadd.f32 %v1132, %v1138
    %v1142 = vmax.f32 %v1140, 0.0
    %v1143 = vmax.f32 %v1141, 0.0
    %v1144 = vld [vmem:[%s2] sm:$0x3]
    %v1146 = vsel %vm51, %v1144, 0
    %1148 = vmatprep.subr.mxu0 0.0
    %1149 = vmatpush1.msra.mxu0 %v1142
    %1150 = vmatprep.subr.mxu0 0.0
    %1151 = vmatpush1.msra.mxu0 %v1143
    %1152 = vmatprep.subr.mxu0 0.0
    %1153 = vmatpush1.msra.mxu0 0.0
    %1154 = vmatprep.subr.mxu0 0.0
    %1155 = vmatpush1.msra.mxu0 0.0
    %1156 = vmatprep.subr.mxu0 0.0
    %1157 = vmatpush1.msra.mxu0 0.0
    %1158 = vmatprep.subr.mxu0 0.0
    %1159 = vmatpush1.msra.mxu0 0.0
    %1160 = vmatprep.subr.mxu0 0.0
    %1161 = vmatpush1.msra.mxu0 0.0
    %1162 = vmatprep.subr.mxu0 0.0
    %1163 = vmatpush1.msra.mxu0 0.0
    %1164 = vmatprep.subr.mxu0 0.0
    %1165 = vmatpush1.msra.mxu0 0.0
    %1166 = vmatprep.subr.mxu0 0.0
    %1167 = vmatpush1.msra.mxu0 0.0
    %1168 = vmatprep.subr.mxu0 0.0
    %1169 = vmatpush1.msra.mxu0 0.0
    %1170 = vmatprep.subr.mxu0 0.0
    %1171 = vmatpush1.msra.mxu0 0.0
    %1172 = vmatprep.subr.mxu0 0.0
    %1173 = vmatpush1.msra.mxu0 0.0
    %1174 = vmatprep.subr.mxu0 0.0
    %1175 = vmatpush1.msra.mxu0 0.0
    %1176 = vmatprep.subr.mxu0 0.0
    %1177 = vmatpush1.msra.mxu0 0.0
    %1178 = vmatprep.subr.mxu0 0.0
    %1179 = vmatpush1.msra.mxu0 0.0
    %1180 = vmatprep.subr.mxu0 0.0
    %1181 = vmatpush1.msra.mxu0 0.0
    %1182 = vmatprep.subr.mxu0 0.0
    %1183 = vmatpush1.msra.mxu0 0.0
    %1184 = vmatprep.subr.mxu0 0.0
    %1185 = vmatpush1.msra.mxu0 0.0
    %1186 = vmatprep.subr.mxu0 0.0
    %1187 = vmatpush1.msra.mxu0 0.0
    %1188 = vmatprep.subr.mxu0 0.0
    %1189 = vmatpush1.msra.mxu0 0.0
    %1190 = vmatprep.subr.mxu0 0.0
    %1191 = vmatpush1.msra.mxu0 0.0
    %1192 = vmatprep.subr.mxu0 0.0
    %1193 = vmatpush1.msra.mxu0 0.0
    %1194 = vmatprep.subr.mxu0 0.0
    %1195 = vmatpush1.msra.mxu0 0.0
    %1196 = vmatprep.subr.mxu0 0.0
    %1197 = vmatpush1.msra.mxu0 0.0
    %1198 = vmatprep.subr.mxu0 0.0
    %1199 = vmatpush1.msra.mxu0 0.0
    %1200 = vmatprep.subr.mxu0 0.0
    %1201 = vmatpush1.msra.mxu0 0.0
    %1202 = vmatprep.subr.mxu0 0.0
    %1203 = vmatpush1.msra.mxu0 0.0
    %1204 = vmatprep.subr.mxu0 0.0
    %1205 = vmatpush1.msra.mxu0 0.0
    %1206 = vmatprep.subr.mxu0 0.0
    %1207 = vmatpush1.msra.mxu0 0.0
    %1208 = vmatprep.subr.mxu0 0.0
    %1209 = vmatpush1.msra.mxu0 0.0
    %1210 = vmatprep.subr.mxu0 0.0
    %1211 = vmatpush1.msra.mxu0 0.0
    %1212 = vmatprep.mubr.f32.mxu0 0.0
    %1213 = vmatmul.mubr.f32.gmra.mrb[0].mxu0 %v1146
    %v1214 = vpop.f32.mrb[0].mxu0
    %v1215 = vadd.f32 0.0, %v1214
    %v1216 = vpop.f32.mrb[0].mxu0
    %1217 = vdwg.mxu0
    %v1218 = vld [vmem:[%s9] sm:$0xff]
    %v1219 = vld [vmem:[%s9 + $0x8] sm:$0xff]
    %v1220 = vld [vmem:[%s9 + $0x10] sm:$0xff]
    %v1221 = vld [vmem:[%s9 + $0x18] sm:$0xff]
    %v1222 = vld [vmem:[%s9 + $0x20] sm:$0xff]
    %v1223 = vld [vmem:[%s9 + $0x28] sm:$0xff]
    %v1224 = vld [vmem:[%s9 + $0x30] sm:$0xff]
    %v1225 = vld [vmem:[%s9 + $0x38] sm:$0xff]
    %v1226 = vld [vmem:[%s9 + $0x40] sm:$0xff]
    %v1227 = vld [vmem:[%s9 + $0x48] sm:$0xff]
    %v1228 = vld [vmem:[%s9 + $0x50] sm:$0xff]
    %v1229 = vld [vmem:[%s9 + $0x58] sm:$0xff]
    %v1230 = vld [vmem:[%s9 + $0x60] sm:$0xff]
    %v1231 = vld [vmem:[%s9 + $0x68] sm:$0xff]
    %v1232 = vld [vmem:[%s9 + $0x70] sm:$0xff]
    %v1233 = vld [vmem:[%s9 + $0x78] sm:$0xff]
    %v1234 = vld [vmem:[%s10] sm:$0x1]
    %v1236 = vlaneseq
    %v1237 = vshrl.u32 %v1236, 7
    %v1238 = vsub.s32 0, %v1237
    %v1239 = vrot.slane %v1234, %v1238
    %1241 = vmatprep.subr.mxu0 0.0
    %1242 = vmatpush1.msra.mxu0 %v1218
    %1243 = vmatprep.subr.mxu0 0.0
    %1244 = vmatpush1.msra.mxu0 %v1219
    %1245 = vmatprep.subr.mxu0 0.0
    %1246 = vmatpush1.msra.mxu0 %v1220
    %1247 = vmatprep.subr.mxu0 0.0
    %1248 = vmatpush1.msra.mxu0 %v1221
    %1249 = vmatprep.subr.mxu0 0.0
    %1250 = vmatpush1.msra.mxu0 %v1222
    %1251 = vmatprep.subr.mxu0 0.0
    %1252 = vmatpush1.msra.mxu0 %v1223
    %1253 = vmatprep.subr.mxu0 0.0
    %1254 = vmatpush1.msra.mxu0 %v1224
    %1255 = vmatprep.subr.mxu0 0.0
    %1256 = vmatpush1.msra.mxu0 %v1225
    %1257 = vmatprep.subr.mxu0 0.0
    %1258 = vmatpush1.msra.mxu0 %v1226
    %1259 = vmatprep.subr.mxu0 0.0
    %1260 = vmatpush1.msra.mxu0 %v1227
    %1261 = vmatprep.subr.mxu0 0.0
    %1262 = vmatpush1.msra.mxu0 %v1228
    %1263 = vmatprep.subr.mxu0 0.0
    %1264 = vmatpush1.msra.mxu0 %v1229
    %1265 = vmatprep.subr.mxu0 0.0
    %1266 = vmatpush1.msra.mxu0 %v1230
    %1267 = vmatprep.subr.mxu0 0.0
    %1268 = vmatpush1.msra.mxu0 %v1231
    %1269 = vmatprep.subr.mxu0 0.0
    %1270 = vmatpush1.msra.mxu0 %v1232
    %1271 = vmatprep.subr.mxu0 0.0
    %1272 = vmatpush1.msra.mxu0 %v1233
    %1273 = vmatprep.subr.mxu0 0.0
    %1274 = vmatpush1.msra.mxu0 0.0
    %1275 = vmatprep.subr.mxu0 0.0
    %1276 = vmatpush1.msra.mxu0 0.0
    %1277 = vmatprep.subr.mxu0 0.0
    %1278 = vmatpush1.msra.mxu0 0.0
    %1279 = vmatprep.subr.mxu0 0.0
    %1280 = vmatpush1.msra.mxu0 0.0
    %1281 = vmatprep.subr.mxu0 0.0
    %1282 = vmatpush1.msra.mxu0 0.0
    %1283 = vmatprep.subr.mxu0 0.0
    %1284 = vmatpush1.msra.mxu0 0.0
    %1285 = vmatprep.subr.mxu0 0.0
    %1286 = vmatpush1.msra.mxu0 0.0
    %1287 = vmatprep.subr.mxu0 0.0
    %1288 = vmatpush1.msra.mxu0 0.0
    %1289 = vmatprep.subr.mxu0 0.0
    %1290 = vmatpush1.msra.mxu0 0.0
    %1291 = vmatprep.subr.mxu0 0.0
    %1292 = vmatpush1.msra.mxu0 0.0
    %1293 = vmatprep.subr.mxu0 0.0
    %1294 = vmatpush1.msra.mxu0 0.0
    %1295 = vmatprep.subr.mxu0 0.0
    %1296 = vmatpush1.msra.mxu0 0.0
    %1297 = vmatprep.subr.mxu0 0.0
    %1298 = vmatpush1.msra.mxu0 0.0
    %1299 = vmatprep.subr.mxu0 0.0
    %1300 = vmatpush1.msra.mxu0 0.0
    %1301 = vmatprep.subr.mxu0 0.0
    %1302 = vmatpush1.msra.mxu0 0.0
    %1303 = vmatprep.subr.mxu0 0.0
    %1304 = vmatpush1.msra.mxu0 0.0
    %1305 = vmatprep.mubr.f32.mxu0 0.0
    %1306 = vmatmul.mubr.f32.gmra.mrb[0].mxu0 %v1215
    %v1307 = vpop.f32.mrb[0].mxu0
    %v1308 = vadd.f32 %v1239, %v1307
    %v1309 = vpop.f32.mrb[0].mxu0
    %1310 = vdwg.mxu0
    %1311 = vst [vmem:[#allocation2] sm:$0x3] %v1308
    // Predicated region
    $region46: #{gcn_forward.1} parent=1 // pred_check
      _
    $region47: #{gcn_forward.1} parent=1 // pred_check_branch
      %1313 = sbr.rel (0) target = $region49
    $region48: #{gcn_forward.1} parent=1 // pred_region
      %s1315 = ssub.s32 32, 32
      %1316 = vsyncadd [#allocation3], %s1315
      %s1318 = sshll.u32 [#allocation2], 4
      %s1319 = int_to_ptr.vmem [resolvable:$true] %s1318
      %1321 = dma.vmem_to_hbm [thread:$0]  %s1319, 32, %s11, [#allocation3]
    $region49: #{gcn_forward.1} parent=1 // pred_fallthru
      _
    // Predicated region
    $region50: #{gcn_forward.1} parent=1 // pred_check
      _
    $region51: #{gcn_forward.1} parent=1 // pred_check_branch
      %1323 = sbr.rel (0) target = $region53
    $region52: #{gcn_forward.1} parent=1 // pred_region
      %1324 = dma.done [#allocation3], 32
    $region53: #{gcn_forward.1} parent=1 // pred_fallthru
      _
    %1325 = vsyncpa [#allocation3], 1

</llo_original>
